<compile_context>
chip_gen: v5e
topology: v5e:2x2
jax: 0.10.0
libtpu: 0.0.40
codegen_flags: <defaults>
</compile_context>

<pallas_src>
import jax
import jax.numpy as jnp
from jax import lax
from jax.experimental import pallas as pl
from jax.experimental.pallas import tpu as pltpu
import numpy as np


# ---------------------------------------------------------------------------
# Fused kernel: encoder + concat(mean,max) pool + embedding (per T-chunk),
# then rank-based top-R/bottom-R selection + output Linear at the last chunk.
# Grid is (batch blocks [parallel], T chunks [arbitrary]).
# ---------------------------------------------------------------------------
def make_chowder_kernel(C, F, T, Tc, R, NC, num_chunks):

    def kernel(x_ref, wpack_ref, wout_ref, out_ref, scores_ref):
        ti = pl.program_id(1)
        x = x_ref[...]                                  # (bb, C, Tc, HW)

        # ---- encoder + concat(mean,max) pool + Conv1d embedding, fused.
        # Per output feature f:
        #   slab_f = relu(sum_c x_c * Wenc[f, c] + benc[f])        (VPU MACs)
        #   score += mean(slab_f) * w_avg[f] + max(slab_f) * w_max[f]
        # All weights are SMEM scalars (splat for free into the VPU ops); the
        # (Tc, F, HW) feature map is never materialized.
        # TODO(synk): at a real backbone feature width this unrolled Python
        # loop becomes a lax.fori_loop over features (dynamic SMEM reads); the
        # MXU formulation (x as (Tc*HW, C) @ (C, F)) is worth measuring then.
        score = None
        for f in range(F):
            slab = x[:, 0:1, :, :] * wpack_ref[0, f]
            for c in range(1, C):
                slab = slab + x[:, c:c + 1, :, :] * wpack_ref[c, f]
            slab = jnp.maximum(slab + wpack_ref[C, f], 0.0)     # (bb,1,Tc,HW)
            savg = jnp.mean(slab, axis=-1, keepdims=True)       # (bb,1,Tc,1)
            smax = jnp.max(slab, axis=-1, keepdims=True)        # (bb,1,Tc,1)
            contrib = savg * wpack_ref[C + 1, f] + smax * wpack_ref[C + 2, f]
            score = contrib if score is None else score + contrib
        score = score + wpack_ref[C + 3, 0]                     # Conv1d bias
        s_chunk = score[:, 0]                                   # (bb, Tc, 1)

        # ---- stash this chunk's per-tile scores (tiny: T floats / sample).
        if num_chunks == 1:
            scores_ref[...] = s_chunk
        else:
            start = pl.multiple_of(ti * Tc, 8)                  # Tc % 8 == 0
            scores_ref[:, pl.ds(start, Tc), :] = s_chunk

        # ---- last chunk: rank-based top-R/bottom-R select + output Linear.
        @pl.when(ti == pl.num_programs(1) - 1)
        def _finalize():
            s_all = scores_ref[...]                             # (bb, T, 1)
            ii = lax.broadcasted_iota(jnp.int32, (T, T), 0)     # sublane = i
            jj = lax.broadcasted_iota(jnp.int32, (T, T), 1)     # lane    = j

            # Lane-oriented copy of the scores via a masked reduce (avoids a
            # tiny minor-dim transpose relayout).
            eye = (ii == jj).astype(jnp.float32)
            s_row = jnp.sum(s_all * eye[None, :, :], axis=1, keepdims=True)

            # Descending rank of tile i; ties broken by index, which is
            # value-identical to torch.sort(descending=True) since only the
            # sorted VALUES are consumed.  NaN scores are undefined here.
            gt = s_row > s_all                                  # (bb, T, T)
            tie = jnp.logical_and(s_row == s_all,
                                  jj[None, :, :] < ii[None, :, :])
            rank = jnp.sum(jnp.logical_or(gt, tie).astype(jnp.int32),
                           axis=-1, keepdims=True)              # (bb, T, 1)

            # Fold the one-hot rank selection straight into the output
            # Linear(2R -> NC, bias=False): out = sum_t s_t * Wsel[t, :].
            wout = wout_ref[...]                                # (2R, NC)
            wsel = None
            for k in range(2 * R):
                pos = k if k < R else T - 2 * R + k             # top-R, bottom-R
                term = ((rank == pos).astype(jnp.float32)
                        * wout[k:k + 1, :][None, :, :])         # (bb, T, NC)
                wsel = term if wsel is None else wsel + term
            out_ref[...] = jnp.sum(s_all * wsel, axis=1, keepdims=True)

    return kernel


# ---------------------------------------------------------------------------
# Wrapper
# ---------------------------------------------------------------------------
def _tpu_is_v7x():
    try:
        kind = jax.devices()[0].device_kind.lower()
    except Exception:
        return False
    return ("v7" in kind) or ("tpu7" in kind)


def chowder_forward(x, params, R=4, batch_block=None, tile_chunk=None):
    """x: (B, T, C, H, W) float32 (per-tile NCHW, like the PyTorch module)."""
    B, T, C, H, W_ = x.shape
    HW = H * W_
    Wenc = params["Wenc"]          # (F, C)   synthetic backbone pointwise conv
    benc = params["benc"]          # (F, 1)
    wemb = params["wemb"]          # (2F, 1)  Conv1d(1, 1, kernel_size=2F) weight
    bemb = params["bemb"]          # (1,)     Conv1d bias
    Wout = params["Wout"]          # (2R, NC) Linear(2R, NC, bias=False), transposed
    F = Wenc.shape[0]
    NC = Wout.shape[1]
    assert 2 * R <= T, "ChowderModel requires 2*R <= num_tiles"

    is_v7x = _tpu_is_v7x()

    # Batch blocking: fold the whole batch on single-TC chips (v5e/v6e); keep
    # a >= 2-wide parallel batch axis on v7x so both TensorCores get work.
    if batch_block is None:
        batch_block = B // 2 if (is_v7x and B >= 2 and B % 2 == 0) else B
    if B % batch_block:
        batch_block = 1
    bb = batch_block
    nb = B // bb

    # T-chunk sizing ("arbitrary" axis): keep the double-buffered x block
    # inside a chip-aware VMEM budget (v7x: 64 MiB physical, v5e/v6e: 128 MiB).
    if tile_chunk is None:
        budget = (24 << 20) if is_v7x else (48 << 20)
        per_tile = bb * C * HW * 4
        cap = max(8, budget // max(1, 2 * per_tile))
        cands = [d for d in range(1, T + 1)
                 if T % d == 0 and (d == T or d % 8 == 0)]
        fitting = [d for d in cands if d <= cap]
        tile_chunk = max(fitting) if fitting else min(cands)
    Tc = tile_chunk
    assert T % Tc == 0 and (Tc == T or Tc % 8 == 0)
    nt = T // Tc

    # Sublane/lane-friendly x layout: (B, C, T, HW) so the block's minor dims
    # are (Tc, HW).  (In a real pipeline the producer emits this layout.)
    x_r = jnp.transpose(x, (0, 2, 1, 3, 4)).reshape(B, C, T, HW)

    # Pack every tiny per-feature weight into ONE small SMEM array:
    # rows 0..C-1 = Wenc[:, c] per channel, row C = benc, row C+1 = w_avg,
    # row C+2 = w_max, row C+3 col 0 = Conv1d bias.
    wpack = jnp.zeros((C + 4, F), jnp.float32)
    wpack = wpack.at[:C, :].set(jnp.transpose(Wenc))
    wpack = wpack.at[C, :].set(benc[:, 0])
    wpack = wpack.at[C + 1, :].set(wemb[:F, 0])
    wpack = wpack.at[C + 2, :].set(wemb[F:, 0])
    wpack = wpack.at[C + 3, 0].set(bemb[0])

    # Deeper x buffering only pays off with enough sequential T-chunks; v5e/v6e
    # have the VMEM headroom for it (dead code at the toy sizes below).
    x_spec_kwargs = {}
    if (not is_v7x) and nt >= 3 and hasattr(pl, "Buffered"):
        x_spec_kwargs["pipeline_mode"] = pl.Buffered(3)
    x_spec = pl.BlockSpec((bb, C, Tc, HW), lambda b, t: (b, 0, t, 0),
                          **x_spec_kwargs)

    out = pl.pallas_call(
        make_chowder_kernel(C, F, T, Tc, R, NC, nt),
        out_shape=jax.ShapeDtypeStruct((B, 1, NC), jnp.float32),
        grid=(nb, nt),
        in_specs=[
            x_spec,                                               # x
            pl.BlockSpec(memory_space=pltpu.MemorySpace.SMEM),    # packed scalars
            pl.BlockSpec((2 * R, NC), lambda b, t: (0, 0)),       # Wout
        ],
        out_specs=pl.BlockSpec((bb, 1, NC), lambda b, t: (b, 0, 0)),
        scratch_shapes=[pltpu.VMEM((bb, T, 1), jnp.float32)],     # per-tile scores
        compiler_params=pltpu.CompilerParams(
            dimension_semantics=("parallel", "arbitrary"),
            vmem_limit_bytes=(48 << 20) if is_v7x else (64 << 20)),
    )(x_r, wpack, Wout)
    return out.reshape(B, NC)


# ---------------------------------------------------------------------------
# Pure-JAX reference (for correctness check)
# ---------------------------------------------------------------------------
def ref_forward(x, params, R=4):
    B, T, C, H, W_ = x.shape
    Wenc, benc = params["Wenc"], params["benc"]
    wemb, bemb = params["wemb"], params["bemb"]
    Wout = params["Wout"]
    x_r = x.reshape(B, T, C, H * W_)
    feat = jnp.einsum("btch,fc->btfh", x_r, Wenc) + benc[None, None, :, :]
    feat = jnp.maximum(feat, 0.0)                               # (B, T, F, HW)
    avg = feat.mean(axis=-1)
    mx = feat.max(axis=-1)
    pooled = jnp.concatenate([avg, mx], axis=-1)                # (B, T, 2F)
    scores = jnp.einsum("btf,f->bt", pooled, wemb[:, 0]) + bemb[0]
    ssort = -jnp.sort(-scores, axis=1)                          # descending
    x_minmax = jnp.concatenate([ssort[:, :R], ssort[:, -R:]], axis=1)
    return x_minmax @ Wout


if __name__ == "__main__":
    # Small shapes consistent with the module: batch=2 slides, 8 tiles each,
    # 16x16 spatial, 4 channels; synthetic backbone feature dim F=16 so the
    # "concat" pool gives in_features = 2F = 32; J=1, R=4, num_classes=6.
    B, T, H, W, C = 2, 8, 16, 16, 4
    F = 16
    R = 4
    NUM_CLASSES = 6

    key = jax.random.PRNGKey(0)
    kx, k1, k2, k3, k4, k5 = jax.random.split(key, 6)

    x = jax.random.normal(kx, (B, T, C, H, W), dtype=jnp.float32)

    params = {
        # synthetic backbone: pointwise conv C -> F (+ReLU in kernel)
        "Wenc": 0.1 * jax.random.normal(k1, (F, C), dtype=jnp.float32),
        "benc": 0.1 * jax.random.normal(k2, (F, 1), dtype=jnp.float32),
        # emb_layer = nn.Conv1d(1, J=1, kernel_size=in_features=2F)
        "wemb": 0.1 * jax.random.normal(k3, (2 * F, 1), dtype=jnp.float32),
        "bemb": 0.1 * jax.random.normal(k4, (1,), dtype=jnp.float32),
        # output_net = nn.Linear(2R, num_classes, bias=False); stored transposed
        "Wout": 0.1 * jax.random.normal(k5, (2 * R, NUM_CLASSES), dtype=jnp.float32),
    }

    out = jax.block_until_ready(chowder_forward(x, params, R=R))
    ref = jax.block_until_ready(ref_forward(x, params, R=R))
    np.testing.assert_allclose(np.asarray(out), np.asarray(ref),
                               rtol=1e-2, atol=1e-3)

    assert out.shape == (B, NUM_CLASSES)
    print("KERNEL_OK")
</pallas_src>

<mosaic_0001>
module attributes {stable_mosaic.version = 11 : i64} {
  func.func @kernel(%arg0: i32, %arg1: i32, %arg2: memref<2x4x8x256xf32, #tpu.memory_space<vmem>>, %arg3: memref<8x16xf32, #tpu.memory_space<smem>>, %arg4: memref<8x6xf32, #tpu.memory_space<vmem>>, %arg5: memref<2x1x6xf32, #tpu.memory_space<vmem>>, %arg6: memref<2x8x1xf32, #tpu.memory_space<vmem>>) attributes {dimension_semantics = [#tpu.dimension_semantics<parallel>, #tpu.dimension_semantics<arbitrary>], iteration_bounds = array<i64: 1, 1>, scalar_prefetch = 0 : i64, scratch_operands = 1 : i64, tpu.core_type = #tpu.core_type<tc>, window_params = [{transform_indices = @transform_0, window_bounds = array<i64: 2, 4, 8, 256>}, {transform_indices = @transform_1, window_bounds = array<i64: 8, 16>}, {pipeline_mode = #tpu.pipeline_mode<synchronous>, transform_indices = @transform_2, window_bounds = array<i64: 8, 6>}, {transform_indices = @transform_3, window_bounds = array<i64: 2, 1, 6>}]} {
    %c0 = arith.constant 0 : index
    %c0_0 = arith.constant 0 : index
    %c0_1 = arith.constant 0 : index
    %c0_2 = arith.constant 0 : index
    %0 = vector.load %arg2[%c0, %c0_0, %c0_1, %c0_2] : memref<2x4x8x256xf32, #tpu.memory_space<vmem>>, vector<2x4x8x256xf32>
    %1 = vector.extract_strided_slice %0 {offsets = [0, 0, 0, 0], sizes = [2, 1, 8, 256], strides = [1, 1, 1, 1]} : vector<2x4x8x256xf32> to vector<2x1x8x256xf32>
    %c0_3 = arith.constant 0 : index
    %c0_4 = arith.constant 0 : index
    %2 = memref.load %arg3[%c0_3, %c0_4] : memref<8x16xf32, #tpu.memory_space<smem>>
    %3 = vector.broadcast %2 : f32 to vector<2x1x8x256xf32>
    %4 = arith.mulf %1, %3 : vector<2x1x8x256xf32>
    %5 = vector.extract_strided_slice %0 {offsets = [0, 1, 0, 0], sizes = [2, 1, 8, 256], strides = [1, 1, 1, 1]} : vector<2x4x8x256xf32> to vector<2x1x8x256xf32>
    %c1 = arith.constant 1 : index
    %c0_5 = arith.constant 0 : index
    %6 = memref.load %arg3[%c1, %c0_5] : memref<8x16xf32, #tpu.memory_space<smem>>
    %7 = vector.broadcast %6 : f32 to vector<2x1x8x256xf32>
    %8 = arith.mulf %5, %7 : vector<2x1x8x256xf32>
    %9 = arith.addf %4, %8 : vector<2x1x8x256xf32>
    %10 = vector.extract_strided_slice %0 {offsets = [0, 2, 0, 0], sizes = [2, 1, 8, 256], strides = [1, 1, 1, 1]} : vector<2x4x8x256xf32> to vector<2x1x8x256xf32>
    %c2 = arith.constant 2 : index
    %c0_6 = arith.constant 0 : index
    %11 = memref.load %arg3[%c2, %c0_6] : memref<8x16xf32, #tpu.memory_space<smem>>
    %12 = vector.broadcast %11 : f32 to vector<2x1x8x256xf32>
    %13 = arith.mulf %10, %12 : vector<2x1x8x256xf32>
    %14 = arith.addf %9, %13 : vector<2x1x8x256xf32>
    %15 = vector.extract_strided_slice %0 {offsets = [0, 3, 0, 0], sizes = [2, 1, 8, 256], strides = [1, 1, 1, 1]} : vector<2x4x8x256xf32> to vector<2x1x8x256xf32>
    %c3 = arith.constant 3 : index
    %c0_7 = arith.constant 0 : index
    %16 = memref.load %arg3[%c3, %c0_7] : memref<8x16xf32, #tpu.memory_space<smem>>
    %17 = vector.broadcast %16 : f32 to vector<2x1x8x256xf32>
    %18 = arith.mulf %15, %17 : vector<2x1x8x256xf32>
    %19 = arith.addf %14, %18 : vector<2x1x8x256xf32>
    %c4 = arith.constant 4 : index
    %c0_8 = arith.constant 0 : index
    %20 = memref.load %arg3[%c4, %c0_8] : memref<8x16xf32, #tpu.memory_space<smem>>
    %21 = vector.broadcast %20 : f32 to vector<2x1x8x256xf32>
    %22 = arith.addf %19, %21 : vector<2x1x8x256xf32>
    %cst = arith.constant 0.000000e+00 : f32
    %23 = vector.broadcast %cst : f32 to vector<2x1x8x256xf32>
    %24 = arith.maximumf %22, %23 : vector<2x1x8x256xf32>
    %cst_9 = arith.constant dense<0.000000e+00> : vector<2x1x8xf32>
    %25 = vector.multi_reduction <add>, %24, %cst_9 [3] : vector<2x1x8x256xf32> to vector<2x1x8xf32>
    %26 = vector.shape_cast %25 : vector<2x1x8xf32> to vector<2x1x8x1xf32>
    %cst_10 = arith.constant 2.560000e+02 : f32
    %27 = vector.broadcast %cst_10 : f32 to vector<2x1x8x1xf32>
    %28 = arith.divf %26, %27 : vector<2x1x8x1xf32>
    %cst_11 = arith.constant dense<0xFF800000> : vector<2x1x8xf32>
    %29 = vector.multi_reduction <maximumf>, %24, %cst_11 [3] : vector<2x1x8x256xf32> to vector<2x1x8xf32>
    %30 = vector.shape_cast %29 : vector<2x1x8xf32> to vector<2x1x8x1xf32>
    %c5 = arith.constant 5 : index
    %c0_12 = arith.constant 0 : index
    %31 = memref.load %arg3[%c5, %c0_12] : memref<8x16xf32, #tpu.memory_space<smem>>
    %32 = vector.broadcast %31 : f32 to vector<2x1x8x1xf32>
    %33 = arith.mulf %28, %32 : vector<2x1x8x1xf32>
    %c6 = arith.constant 6 : index
    %c0_13 = arith.constant 0 : index
    %34 = memref.load %arg3[%c6, %c0_13] : memref<8x16xf32, #tpu.memory_space<smem>>
    %35 = vector.broadcast %34 : f32 to vector<2x1x8x1xf32>
    %36 = arith.mulf %30, %35 : vector<2x1x8x1xf32>
    %37 = arith.addf %33, %36 : vector<2x1x8x1xf32>
    %38 = vector.extract_strided_slice %0 {offsets = [0, 0, 0, 0], sizes = [2, 1, 8, 256], strides = [1, 1, 1, 1]} : vector<2x4x8x256xf32> to vector<2x1x8x256xf32>
    %c0_14 = arith.constant 0 : index
    %c1_15 = arith.constant 1 : index
    %39 = memref.load %arg3[%c0_14, %c1_15] : memref<8x16xf32, #tpu.memory_space<smem>>
    %40 = vector.broadcast %39 : f32 to vector<2x1x8x256xf32>
    %41 = arith.mulf %38, %40 : vector<2x1x8x256xf32>
    %42 = vector.extract_strided_slice %0 {offsets = [0, 1, 0, 0], sizes = [2, 1, 8, 256], strides = [1, 1, 1, 1]} : vector<2x4x8x256xf32> to vector<2x1x8x256xf32>
    %c1_16 = arith.constant 1 : index
    %c1_17 = arith.constant 1 : index
    %43 = memref.load %arg3[%c1_16, %c1_17] : memref<8x16xf32, #tpu.memory_space<smem>>
    %44 = vector.broadcast %43 : f32 to vector<2x1x8x256xf32>
    %45 = arith.mulf %42, %44 : vector<2x1x8x256xf32>
    %46 = arith.addf %41, %45 : vector<2x1x8x256xf32>
    %47 = vector.extract_strided_slice %0 {offsets = [0, 2, 0, 0], sizes = [2, 1, 8, 256], strides = [1, 1, 1, 1]} : vector<2x4x8x256xf32> to vector<2x1x8x256xf32>
    %c2_18 = arith.constant 2 : index
    %c1_19 = arith.constant 1 : index
    %48 = memref.load %arg3[%c2_18, %c1_19] : memref<8x16xf32, #tpu.memory_space<smem>>
    %49 = vector.broadcast %48 : f32 to vector<2x1x8x256xf32>
    %50 = arith.mulf %47, %49 : vector<2x1x8x256xf32>
    %51 = arith.addf %46, %50 : vector<2x1x8x256xf32>
    %52 = vector.extract_strided_slice %0 {offsets = [0, 3, 0, 0], sizes = [2, 1, 8, 256], strides = [1, 1, 1, 1]} : vector<2x4x8x256xf32> to vector<2x1x8x256xf32>
    %c3_20 = arith.constant 3 : index
    %c1_21 = arith.constant 1 : index
    %53 = memref.load %arg3[%c3_20, %c1_21] : memref<8x16xf32, #tpu.memory_space<smem>>
    %54 = vector.broadcast %53 : f32 to vector<2x1x8x256xf32>
    %55 = arith.mulf %52, %54 : vector<2x1x8x256xf32>
    %56 = arith.addf %51, %55 : vector<2x1x8x256xf32>
    %c4_22 = arith.constant 4 : index
    %c1_23 = arith.constant 1 : index
    %57 = memref.load %arg3[%c4_22, %c1_23] : memref<8x16xf32, #tpu.memory_space<smem>>
    %58 = vector.broadcast %57 : f32 to vector<2x1x8x256xf32>
    %59 = arith.addf %56, %58 : vector<2x1x8x256xf32>
    %cst_24 = arith.constant 0.000000e+00 : f32
    %60 = vector.broadcast %cst_24 : f32 to vector<2x1x8x256xf32>
    %61 = arith.maximumf %59, %60 : vector<2x1x8x256xf32>
    %cst_25 = arith.constant dense<0.000000e+00> : vector<2x1x8xf32>
    %62 = vector.multi_reduction <add>, %61, %cst_25 [3] : vector<2x1x8x256xf32> to vector<2x1x8xf32>
    %63 = vector.shape_cast %62 : vector<2x1x8xf32> to vector<2x1x8x1xf32>
    %cst_26 = arith.constant 2.560000e+02 : f32
    %64 = vector.broadcast %cst_26 : f32 to vector<2x1x8x1xf32>
    %65 = arith.divf %63, %64 : vector<2x1x8x1xf32>
    %cst_27 = arith.constant dense<0xFF800000> : vector<2x1x8xf32>
    %66 = vector.multi_reduction <maximumf>, %61, %cst_27 [3] : vector<2x1x8x256xf32> to vector<2x1x8xf32>
    %67 = vector.shape_cast %66 : vector<2x1x8xf32> to vector<2x1x8x1xf32>
    %c5_28 = arith.constant 5 : index
    %c1_29 = arith.constant 1 : index
    %68 = memref.load %arg3[%c5_28, %c1_29] : memref<8x16xf32, #tpu.memory_space<smem>>
    %69 = vector.broadcast %68 : f32 to vector<2x1x8x1xf32>
    %70 = arith.mulf %65, %69 : vector<2x1x8x1xf32>
    %c6_30 = arith.constant 6 : index
    %c1_31 = arith.constant 1 : index
    %71 = memref.load %arg3[%c6_30, %c1_31] : memref<8x16xf32, #tpu.memory_space<smem>>
    %72 = vector.broadcast %71 : f32 to vector<2x1x8x1xf32>
    %73 = arith.mulf %67, %72 : vector<2x1x8x1xf32>
    %74 = arith.addf %70, %73 : vector<2x1x8x1xf32>
    %75 = arith.addf %37, %74 : vector<2x1x8x1xf32>
    %76 = vector.extract_strided_slice %0 {offsets = [0, 0, 0, 0], sizes = [2, 1, 8, 256], strides = [1, 1, 1, 1]} : vector<2x4x8x256xf32> to vector<2x1x8x256xf32>
    %c0_32 = arith.constant 0 : index
    %c2_33 = arith.constant 2 : index
    %77 = memref.load %arg3[%c0_32, %c2_33] : memref<8x16xf32, #tpu.memory_space<smem>>
    %78 = vector.broadcast %77 : f32 to vector<2x1x8x256xf32>
    %79 = arith.mulf %76, %78 : vector<2x1x8x256xf32>
    %80 = vector.extract_strided_slice %0 {offsets = [0, 1, 0, 0], sizes = [2, 1, 8, 256], strides = [1, 1, 1, 1]} : vector<2x4x8x256xf32> to vector<2x1x8x256xf32>
    %c1_34 = arith.constant 1 : index
    %c2_35 = arith.constant 2 : index
    %81 = memref.load %arg3[%c1_34, %c2_35] : memref<8x16xf32, #tpu.memory_space<smem>>
    %82 = vector.broadcast %81 : f32 to vector<2x1x8x256xf32>
    %83 = arith.mulf %80, %82 : vector<2x1x8x256xf32>
    %84 = arith.addf %79, %83 : vector<2x1x8x256xf32>
    %85 = vector.extract_strided_slice %0 {offsets = [0, 2, 0, 0], sizes = [2, 1, 8, 256], strides = [1, 1, 1, 1]} : vector<2x4x8x256xf32> to vector<2x1x8x256xf32>
    %c2_36 = arith.constant 2 : index
    %c2_37 = arith.constant 2 : index
    %86 = memref.load %arg3[%c2_36, %c2_37] : memref<8x16xf32, #tpu.memory_space<smem>>
    %87 = vector.broadcast %86 : f32 to vector<2x1x8x256xf32>
    %88 = arith.mulf %85, %87 : vector<2x1x8x256xf32>
    %89 = arith.addf %84, %88 : vector<2x1x8x256xf32>
    %90 = vector.extract_strided_slice %0 {offsets = [0, 3, 0, 0], sizes = [2, 1, 8, 256], strides = [1, 1, 1, 1]} : vector<2x4x8x256xf32> to vector<2x1x8x256xf32>
    %c3_38 = arith.constant 3 : index
    %c2_39 = arith.constant 2 : index
    %91 = memref.load %arg3[%c3_38, %c2_39] : memref<8x16xf32, #tpu.memory_space<smem>>
    %92 = vector.broadcast %91 : f32 to vector<2x1x8x256xf32>
    %93 = arith.mulf %90, %92 : vector<2x1x8x256xf32>
    %94 = arith.addf %89, %93 : vector<2x1x8x256xf32>
    %c4_40 = arith.constant 4 : index
    %c2_41 = arith.constant 2 : index
    %95 = memref.load %arg3[%c4_40, %c2_41] : memref<8x16xf32, #tpu.memory_space<smem>>
    %96 = vector.broadcast %95 : f32 to vector<2x1x8x256xf32>
    %97 = arith.addf %94, %96 : vector<2x1x8x256xf32>
    %cst_42 = arith.constant 0.000000e+00 : f32
    %98 = vector.broadcast %cst_42 : f32 to vector<2x1x8x256xf32>
    %99 = arith.maximumf %97, %98 : vector<2x1x8x256xf32>
    %cst_43 = arith.constant dense<0.000000e+00> : vector<2x1x8xf32>
    %100 = vector.multi_reduction <add>, %99, %cst_43 [3] : vector<2x1x8x256xf32> to vector<2x1x8xf32>
    %101 = vector.shape_cast %100 : vector<2x1x8xf32> to vector<2x1x8x1xf32>
    %cst_44 = arith.constant 2.560000e+02 : f32
    %102 = vector.broadcast %cst_44 : f32 to vector<2x1x8x1xf32>
    %103 = arith.divf %101, %102 : vector<2x1x8x1xf32>
    %cst_45 = arith.constant dense<0xFF800000> : vector<2x1x8xf32>
    %104 = vector.multi_reduction <maximumf>, %99, %cst_45 [3] : vector<2x1x8x256xf32> to vector<2x1x8xf32>
    %105 = vector.shape_cast %104 : vector<2x1x8xf32> to vector<2x1x8x1xf32>
    %c5_46 = arith.constant 5 : index
    %c2_47 = arith.constant 2 : index
    %106 = memref.load %arg3[%c5_46, %c2_47] : memref<8x16xf32, #tpu.memory_space<smem>>
    %107 = vector.broadcast %106 : f32 to vector<2x1x8x1xf32>
    %108 = arith.mulf %103, %107 : vector<2x1x8x1xf32>
    %c6_48 = arith.constant 6 : index
    %c2_49 = arith.constant 2 : index
    %109 = memref.load %arg3[%c6_48, %c2_49] : memref<8x16xf32, #tpu.memory_space<smem>>
    %110 = vector.broadcast %109 : f32 to vector<2x1x8x1xf32>
    %111 = arith.mulf %105, %110 : vector<2x1x8x1xf32>
    %112 = arith.addf %108, %111 : vector<2x1x8x1xf32>
    %113 = arith.addf %75, %112 : vector<2x1x8x1xf32>
    %114 = vector.extract_strided_slice %0 {offsets = [0, 0, 0, 0], sizes = [2, 1, 8, 256], strides = [1, 1, 1, 1]} : vector<2x4x8x256xf32> to vector<2x1x8x256xf32>
    %c0_50 = arith.constant 0 : index
    %c3_51 = arith.constant 3 : index
    %115 = memref.load %arg3[%c0_50, %c3_51] : memref<8x16xf32, #tpu.memory_space<smem>>
    %116 = vector.broadcast %115 : f32 to vector<2x1x8x256xf32>
    %117 = arith.mulf %114, %116 : vector<2x1x8x256xf32>
    %118 = vector.extract_strided_slice %0 {offsets = [0, 1, 0, 0], sizes = [2, 1, 8, 256], strides = [1, 1, 1, 1]} : vector<2x4x8x256xf32> to vector<2x1x8x256xf32>
    %c1_52 = arith.constant 1 : index
    %c3_53 = arith.constant 3 : index
    %119 = memref.load %arg3[%c1_52, %c3_53] : memref<8x16xf32, #tpu.memory_space<smem>>
    %120 = vector.broadcast %119 : f32 to vector<2x1x8x256xf32>
    %121 = arith.mulf %118, %120 : vector<2x1x8x256xf32>
    %122 = arith.addf %117, %121 : vector<2x1x8x256xf32>
    %123 = vector.extract_strided_slice %0 {offsets = [0, 2, 0, 0], sizes = [2, 1, 8, 256], strides = [1, 1, 1, 1]} : vector<2x4x8x256xf32> to vector<2x1x8x256xf32>
    %c2_54 = arith.constant 2 : index
    %c3_55 = arith.constant 3 : index
    %124 = memref.load %arg3[%c2_54, %c3_55] : memref<8x16xf32, #tpu.memory_space<smem>>
    %125 = vector.broadcast %124 : f32 to vector<2x1x8x256xf32>
    %126 = arith.mulf %123, %125 : vector<2x1x8x256xf32>
    %127 = arith.addf %122, %126 : vector<2x1x8x256xf32>
    %128 = vector.extract_strided_slice %0 {offsets = [0, 3, 0, 0], sizes = [2, 1, 8, 256], strides = [1, 1, 1, 1]} : vector<2x4x8x256xf32> to vector<2x1x8x256xf32>
    %c3_56 = arith.constant 3 : index
    %c3_57 = arith.constant 3 : index
    %129 = memref.load %arg3[%c3_56, %c3_57] : memref<8x16xf32, #tpu.memory_space<smem>>
    %130 = vector.broadcast %129 : f32 to vector<2x1x8x256xf32>
    %131 = arith.mulf %128, %130 : vector<2x1x8x256xf32>
    %132 = arith.addf %127, %131 : vector<2x1x8x256xf32>
    %c4_58 = arith.constant 4 : index
    %c3_59 = arith.constant 3 : index
    %133 = memref.load %arg3[%c4_58, %c3_59] : memref<8x16xf32, #tpu.memory_space<smem>>
    %134 = vector.broadcast %133 : f32 to vector<2x1x8x256xf32>
    %135 = arith.addf %132, %134 : vector<2x1x8x256xf32>
    %cst_60 = arith.constant 0.000000e+00 : f32
    %136 = vector.broadcast %cst_60 : f32 to vector<2x1x8x256xf32>
    %137 = arith.maximumf %135, %136 : vector<2x1x8x256xf32>
    %cst_61 = arith.constant dense<0.000000e+00> : vector<2x1x8xf32>
    %138 = vector.multi_reduction <add>, %137, %cst_61 [3] : vector<2x1x8x256xf32> to vector<2x1x8xf32>
    %139 = vector.shape_cast %138 : vector<2x1x8xf32> to vector<2x1x8x1xf32>
    %cst_62 = arith.constant 2.560000e+02 : f32
    %140 = vector.broadcast %cst_62 : f32 to vector<2x1x8x1xf32>
    %141 = arith.divf %139, %140 : vector<2x1x8x1xf32>
    %cst_63 = arith.constant dense<0xFF800000> : vector<2x1x8xf32>
    %142 = vector.multi_reduction <maximumf>, %137, %cst_63 [3] : vector<2x1x8x256xf32> to vector<2x1x8xf32>
    %143 = vector.shape_cast %142 : vector<2x1x8xf32> to vector<2x1x8x1xf32>
    %c5_64 = arith.constant 5 : index
    %c3_65 = arith.constant 3 : index
    %144 = memref.load %arg3[%c5_64, %c3_65] : memref<8x16xf32, #tpu.memory_space<smem>>
    %145 = vector.broadcast %144 : f32 to vector<2x1x8x1xf32>
    %146 = arith.mulf %141, %145 : vector<2x1x8x1xf32>
    %c6_66 = arith.constant 6 : index
    %c3_67 = arith.constant 3 : index
    %147 = memref.load %arg3[%c6_66, %c3_67] : memref<8x16xf32, #tpu.memory_space<smem>>
    %148 = vector.broadcast %147 : f32 to vector<2x1x8x1xf32>
    %149 = arith.mulf %143, %148 : vector<2x1x8x1xf32>
    %150 = arith.addf %146, %149 : vector<2x1x8x1xf32>
    %151 = arith.addf %113, %150 : vector<2x1x8x1xf32>
    %152 = vector.extract_strided_slice %0 {offsets = [0, 0, 0, 0], sizes = [2, 1, 8, 256], strides = [1, 1, 1, 1]} : vector<2x4x8x256xf32> to vector<2x1x8x256xf32>
    %c0_68 = arith.constant 0 : index
    %c4_69 = arith.constant 4 : index
    %153 = memref.load %arg3[%c0_68, %c4_69] : memref<8x16xf32, #tpu.memory_space<smem>>
    %154 = vector.broadcast %153 : f32 to vector<2x1x8x256xf32>
    %155 = arith.mulf %152, %154 : vector<2x1x8x256xf32>
    %156 = vector.extract_strided_slice %0 {offsets = [0, 1, 0, 0], sizes = [2, 1, 8, 256], strides = [1, 1, 1, 1]} : vector<2x4x8x256xf32> to vector<2x1x8x256xf32>
    %c1_70 = arith.constant 1 : index
    %c4_71 = arith.constant 4 : index
    %157 = memref.load %arg3[%c1_70, %c4_71] : memref<8x16xf32, #tpu.memory_space<smem>>
    %158 = vector.broadcast %157 : f32 to vector<2x1x8x256xf32>
    %159 = arith.mulf %156, %158 : vector<2x1x8x256xf32>
    %160 = arith.addf %155, %159 : vector<2x1x8x256xf32>
    %161 = vector.extract_strided_slice %0 {offsets = [0, 2, 0, 0], sizes = [2, 1, 8, 256], strides = [1, 1, 1, 1]} : vector<2x4x8x256xf32> to vector<2x1x8x256xf32>
    %c2_72 = arith.constant 2 : index
    %c4_73 = arith.constant 4 : index
    %162 = memref.load %arg3[%c2_72, %c4_73] : memref<8x16xf32, #tpu.memory_space<smem>>
    %163 = vector.broadcast %162 : f32 to vector<2x1x8x256xf32>
    %164 = arith.mulf %161, %163 : vector<2x1x8x256xf32>
    %165 = arith.addf %160, %164 : vector<2x1x8x256xf32>
    %166 = vector.extract_strided_slice %0 {offsets = [0, 3, 0, 0], sizes = [2, 1, 8, 256], strides = [1, 1, 1, 1]} : vector<2x4x8x256xf32> to vector<2x1x8x256xf32>
    %c3_74 = arith.constant 3 : index
    %c4_75 = arith.constant 4 : index
    %167 = memref.load %arg3[%c3_74, %c4_75] : memref<8x16xf32, #tpu.memory_space<smem>>
    %168 = vector.broadcast %167 : f32 to vector<2x1x8x256xf32>
    %169 = arith.mulf %166, %168 : vector<2x1x8x256xf32>
    %170 = arith.addf %165, %169 : vector<2x1x8x256xf32>
    %c4_76 = arith.constant 4 : index
    %c4_77 = arith.constant 4 : index
    %171 = memref.load %arg3[%c4_76, %c4_77] : memref<8x16xf32, #tpu.memory_space<smem>>
    %172 = vector.broadcast %171 : f32 to vector<2x1x8x256xf32>
    %173 = arith.addf %170, %172 : vector<2x1x8x256xf32>
    %cst_78 = arith.constant 0.000000e+00 : f32
    %174 = vector.broadcast %cst_78 : f32 to vector<2x1x8x256xf32>
    %175 = arith.maximumf %173, %174 : vector<2x1x8x256xf32>
    %cst_79 = arith.constant dense<0.000000e+00> : vector<2x1x8xf32>
    %176 = vector.multi_reduction <add>, %175, %cst_79 [3] : vector<2x1x8x256xf32> to vector<2x1x8xf32>
    %177 = vector.shape_cast %176 : vector<2x1x8xf32> to vector<2x1x8x1xf32>
    %cst_80 = arith.constant 2.560000e+02 : f32
    %178 = vector.broadcast %cst_80 : f32 to vector<2x1x8x1xf32>
    %179 = arith.divf %177, %178 : vector<2x1x8x1xf32>
    %cst_81 = arith.constant dense<0xFF800000> : vector<2x1x8xf32>
    %180 = vector.multi_reduction <maximumf>, %175, %cst_81 [3] : vector<2x1x8x256xf32> to vector<2x1x8xf32>
    %181 = vector.shape_cast %180 : vector<2x1x8xf32> to vector<2x1x8x1xf32>
    %c5_82 = arith.constant 5 : index
    %c4_83 = arith.constant 4 : index
    %182 = memref.load %arg3[%c5_82, %c4_83] : memref<8x16xf32, #tpu.memory_space<smem>>
    %183 = vector.broadcast %182 : f32 to vector<2x1x8x1xf32>
    %184 = arith.mulf %179, %183 : vector<2x1x8x1xf32>
    %c6_84 = arith.constant 6 : index
    %c4_85 = arith.constant 4 : index
    %185 = memref.load %arg3[%c6_84, %c4_85] : memref<8x16xf32, #tpu.memory_space<smem>>
    %186 = vector.broadcast %185 : f32 to vector<2x1x8x1xf32>
    %187 = arith.mulf %181, %186 : vector<2x1x8x1xf32>
    %188 = arith.addf %184, %187 : vector<2x1x8x1xf32>
    %189 = arith.addf %151, %188 : vector<2x1x8x1xf32>
    %190 = vector.extract_strided_slice %0 {offsets = [0, 0, 0, 0], sizes = [2, 1, 8, 256], strides = [1, 1, 1, 1]} : vector<2x4x8x256xf32> to vector<2x1x8x256xf32>
    %c0_86 = arith.constant 0 : index
    %c5_87 = arith.constant 5 : index
    %191 = memref.load %arg3[%c0_86, %c5_87] : memref<8x16xf32, #tpu.memory_space<smem>>
    %192 = vector.broadcast %191 : f32 to vector<2x1x8x256xf32>
    %193 = arith.mulf %190, %192 : vector<2x1x8x256xf32>
    %194 = vector.extract_strided_slice %0 {offsets = [0, 1, 0, 0], sizes = [2, 1, 8, 256], strides = [1, 1, 1, 1]} : vector<2x4x8x256xf32> to vector<2x1x8x256xf32>
    %c1_88 = arith.constant 1 : index
    %c5_89 = arith.constant 5 : index
    %195 = memref.load %arg3[%c1_88, %c5_89] : memref<8x16xf32, #tpu.memory_space<smem>>
    %196 = vector.broadcast %195 : f32 to vector<2x1x8x256xf32>
    %197 = arith.mulf %194, %196 : vector<2x1x8x256xf32>
    %198 = arith.addf %193, %197 : vector<2x1x8x256xf32>
    %199 = vector.extract_strided_slice %0 {offsets = [0, 2, 0, 0], sizes = [2, 1, 8, 256], strides = [1, 1, 1, 1]} : vector<2x4x8x256xf32> to vector<2x1x8x256xf32>
    %c2_90 = arith.constant 2 : index
    %c5_91 = arith.constant 5 : index
    %200 = memref.load %arg3[%c2_90, %c5_91] : memref<8x16xf32, #tpu.memory_space<smem>>
    %201 = vector.broadcast %200 : f32 to vector<2x1x8x256xf32>
    %202 = arith.mulf %199, %201 : vector<2x1x8x256xf32>
    %203 = arith.addf %198, %202 : vector<2x1x8x256xf32>
    %204 = vector.extract_strided_slice %0 {offsets = [0, 3, 0, 0], sizes = [2, 1, 8, 256], strides = [1, 1, 1, 1]} : vector<2x4x8x256xf32> to vector<2x1x8x256xf32>
    %c3_92 = arith.constant 3 : index
    %c5_93 = arith.constant 5 : index
    %205 = memref.load %arg3[%c3_92, %c5_93] : memref<8x16xf32, #tpu.memory_space<smem>>
    %206 = vector.broadcast %205 : f32 to vector<2x1x8x256xf32>
    %207 = arith.mulf %204, %206 : vector<2x1x8x256xf32>
    %208 = arith.addf %203, %207 : vector<2x1x8x256xf32>
    %c4_94 = arith.constant 4 : index
    %c5_95 = arith.constant 5 : index
    %209 = memref.load %arg3[%c4_94, %c5_95] : memref<8x16xf32, #tpu.memory_space<smem>>
    %210 = vector.broadcast %209 : f32 to vector<2x1x8x256xf32>
    %211 = arith.addf %208, %210 : vector<2x1x8x256xf32>
    %cst_96 = arith.constant 0.000000e+00 : f32
    %212 = vector.broadcast %cst_96 : f32 to vector<2x1x8x256xf32>
    %213 = arith.maximumf %211, %212 : vector<2x1x8x256xf32>
    %cst_97 = arith.constant dense<0.000000e+00> : vector<2x1x8xf32>
    %214 = vector.multi_reduction <add>, %213, %cst_97 [3] : vector<2x1x8x256xf32> to vector<2x1x8xf32>
    %215 = vector.shape_cast %214 : vector<2x1x8xf32> to vector<2x1x8x1xf32>
    %cst_98 = arith.constant 2.560000e+02 : f32
    %216 = vector.broadcast %cst_98 : f32 to vector<2x1x8x1xf32>
    %217 = arith.divf %215, %216 : vector<2x1x8x1xf32>
    %cst_99 = arith.constant dense<0xFF800000> : vector<2x1x8xf32>
    %218 = vector.multi_reduction <maximumf>, %213, %cst_99 [3] : vector<2x1x8x256xf32> to vector<2x1x8xf32>
    %219 = vector.shape_cast %218 : vector<2x1x8xf32> to vector<2x1x8x1xf32>
    %c5_100 = arith.constant 5 : index
    %c5_101 = arith.constant 5 : index
    %220 = memref.load %arg3[%c5_100, %c5_101] : memref<8x16xf32, #tpu.memory_space<smem>>
    %221 = vector.broadcast %220 : f32 to vector<2x1x8x1xf32>
    %222 = arith.mulf %217, %221 : vector<2x1x8x1xf32>
    %c6_102 = arith.constant 6 : index
    %c5_103 = arith.constant 5 : index
    %223 = memref.load %arg3[%c6_102, %c5_103] : memref<8x16xf32, #tpu.memory_space<smem>>
    %224 = vector.broadcast %223 : f32 to vector<2x1x8x1xf32>
    %225 = arith.mulf %219, %224 : vector<2x1x8x1xf32>
    %226 = arith.addf %222, %225 : vector<2x1x8x1xf32>
    %227 = arith.addf %189, %226 : vector<2x1x8x1xf32>
    %228 = vector.extract_strided_slice %0 {offsets = [0, 0, 0, 0], sizes = [2, 1, 8, 256], strides = [1, 1, 1, 1]} : vector<2x4x8x256xf32> to vector<2x1x8x256xf32>
    %c0_104 = arith.constant 0 : index
    %c6_105 = arith.constant 6 : index
    %229 = memref.load %arg3[%c0_104, %c6_105] : memref<8x16xf32, #tpu.memory_space<smem>>
    %230 = vector.broadcast %229 : f32 to vector<2x1x8x256xf32>
    %231 = arith.mulf %228, %230 : vector<2x1x8x256xf32>
    %232 = vector.extract_strided_slice %0 {offsets = [0, 1, 0, 0], sizes = [2, 1, 8, 256], strides = [1, 1, 1, 1]} : vector<2x4x8x256xf32> to vector<2x1x8x256xf32>
    %c1_106 = arith.constant 1 : index
    %c6_107 = arith.constant 6 : index
    %233 = memref.load %arg3[%c1_106, %c6_107] : memref<8x16xf32, #tpu.memory_space<smem>>
    %234 = vector.broadcast %233 : f32 to vector<2x1x8x256xf32>
    %235 = arith.mulf %232, %234 : vector<2x1x8x256xf32>
    %236 = arith.addf %231, %235 : vector<2x1x8x256xf32>
    %237 = vector.extract_strided_slice %0 {offsets = [0, 2, 0, 0], sizes = [2, 1, 8, 256], strides = [1, 1, 1, 1]} : vector<2x4x8x256xf32> to vector<2x1x8x256xf32>
    %c2_108 = arith.constant 2 : index
    %c6_109 = arith.constant 6 : index
    %238 = memref.load %arg3[%c2_108, %c6_109] : memref<8x16xf32, #tpu.memory_space<smem>>
    %239 = vector.broadcast %238 : f32 to vector<2x1x8x256xf32>
    %240 = arith.mulf %237, %239 : vector<2x1x8x256xf32>
    %241 = arith.addf %236, %240 : vector<2x1x8x256xf32>
    %242 = vector.extract_strided_slice %0 {offsets = [0, 3, 0, 0], sizes = [2, 1, 8, 256], strides = [1, 1, 1, 1]} : vector<2x4x8x256xf32> to vector<2x1x8x256xf32>
    %c3_110 = arith.constant 3 : index
    %c6_111 = arith.constant 6 : index
    %243 = memref.load %arg3[%c3_110, %c6_111] : memref<8x16xf32, #tpu.memory_space<smem>>
    %244 = vector.broadcast %243 : f32 to vector<2x1x8x256xf32>
    %245 = arith.mulf %242, %244 : vector<2x1x8x256xf32>
    %246 = arith.addf %241, %245 : vector<2x1x8x256xf32>
    %c4_112 = arith.constant 4 : index
    %c6_113 = arith.constant 6 : index
    %247 = memref.load %arg3[%c4_112, %c6_113] : memref<8x16xf32, #tpu.memory_space<smem>>
    %248 = vector.broadcast %247 : f32 to vector<2x1x8x256xf32>
    %249 = arith.addf %246, %248 : vector<2x1x8x256xf32>
    %cst_114 = arith.constant 0.000000e+00 : f32
    %250 = vector.broadcast %cst_114 : f32 to vector<2x1x8x256xf32>
    %251 = arith.maximumf %249, %250 : vector<2x1x8x256xf32>
    %cst_115 = arith.constant dense<0.000000e+00> : vector<2x1x8xf32>
    %252 = vector.multi_reduction <add>, %251, %cst_115 [3] : vector<2x1x8x256xf32> to vector<2x1x8xf32>
    %253 = vector.shape_cast %252 : vector<2x1x8xf32> to vector<2x1x8x1xf32>
    %cst_116 = arith.constant 2.560000e+02 : f32
    %254 = vector.broadcast %cst_116 : f32 to vector<2x1x8x1xf32>
    %255 = arith.divf %253, %254 : vector<2x1x8x1xf32>
    %cst_117 = arith.constant dense<0xFF800000> : vector<2x1x8xf32>
    %256 = vector.multi_reduction <maximumf>, %251, %cst_117 [3] : vector<2x1x8x256xf32> to vector<2x1x8xf32>
    %257 = vector.shape_cast %256 : vector<2x1x8xf32> to vector<2x1x8x1xf32>
    %c5_118 = arith.constant 5 : index
    %c6_119 = arith.constant 6 : index
    %258 = memref.load %arg3[%c5_118, %c6_119] : memref<8x16xf32, #tpu.memory_space<smem>>
    %259 = vector.broadcast %258 : f32 to vector<2x1x8x1xf32>
    %260 = arith.mulf %255, %259 : vector<2x1x8x1xf32>
    %c6_120 = arith.constant 6 : index
    %c6_121 = arith.constant 6 : index
    %261 = memref.load %arg3[%c6_120, %c6_121] : memref<8x16xf32, #tpu.memory_space<smem>>
    %262 = vector.broadcast %261 : f32 to vector<2x1x8x1xf32>
    %263 = arith.mulf %257, %262 : vector<2x1x8x1xf32>
    %264 = arith.addf %260, %263 : vector<2x1x8x1xf32>
    %265 = arith.addf %227, %264 : vector<2x1x8x1xf32>
    %266 = vector.extract_strided_slice %0 {offsets = [0, 0, 0, 0], sizes = [2, 1, 8, 256], strides = [1, 1, 1, 1]} : vector<2x4x8x256xf32> to vector<2x1x8x256xf32>
    %c0_122 = arith.constant 0 : index
    %c7 = arith.constant 7 : index
    %267 = memref.load %arg3[%c0_122, %c7] : memref<8x16xf32, #tpu.memory_space<smem>>
    %268 = vector.broadcast %267 : f32 to vector<2x1x8x256xf32>
    %269 = arith.mulf %266, %268 : vector<2x1x8x256xf32>
    %270 = vector.extract_strided_slice %0 {offsets = [0, 1, 0, 0], sizes = [2, 1, 8, 256], strides = [1, 1, 1, 1]} : vector<2x4x8x256xf32> to vector<2x1x8x256xf32>
    %c1_123 = arith.constant 1 : index
    %c7_124 = arith.constant 7 : index
    %271 = memref.load %arg3[%c1_123, %c7_124] : memref<8x16xf32, #tpu.memory_space<smem>>
    %272 = vector.broadcast %271 : f32 to vector<2x1x8x256xf32>
    %273 = arith.mulf %270, %272 : vector<2x1x8x256xf32>
    %274 = arith.addf %269, %273 : vector<2x1x8x256xf32>
    %275 = vector.extract_strided_slice %0 {offsets = [0, 2, 0, 0], sizes = [2, 1, 8, 256], strides = [1, 1, 1, 1]} : vector<2x4x8x256xf32> to vector<2x1x8x256xf32>
    %c2_125 = arith.constant 2 : index
    %c7_126 = arith.constant 7 : index
    %276 = memref.load %arg3[%c2_125, %c7_126] : memref<8x16xf32, #tpu.memory_space<smem>>
    %277 = vector.broadcast %276 : f32 to vector<2x1x8x256xf32>
    %278 = arith.mulf %275, %277 : vector<2x1x8x256xf32>
    %279 = arith.addf %274, %278 : vector<2x1x8x256xf32>
    %280 = vector.extract_strided_slice %0 {offsets = [0, 3, 0, 0], sizes = [2, 1, 8, 256], strides = [1, 1, 1, 1]} : vector<2x4x8x256xf32> to vector<2x1x8x256xf32>
    %c3_127 = arith.constant 3 : index
    %c7_128 = arith.constant 7 : index
    %281 = memref.load %arg3[%c3_127, %c7_128] : memref<8x16xf32, #tpu.memory_space<smem>>
    %282 = vector.broadcast %281 : f32 to vector<2x1x8x256xf32>
    %283 = arith.mulf %280, %282 : vector<2x1x8x256xf32>
    %284 = arith.addf %279, %283 : vector<2x1x8x256xf32>
    %c4_129 = arith.constant 4 : index
    %c7_130 = arith.constant 7 : index
    %285 = memref.load %arg3[%c4_129, %c7_130] : memref<8x16xf32, #tpu.memory_space<smem>>
    %286 = vector.broadcast %285 : f32 to vector<2x1x8x256xf32>
    %287 = arith.addf %284, %286 : vector<2x1x8x256xf32>
    %cst_131 = arith.constant 0.000000e+00 : f32
    %288 = vector.broadcast %cst_131 : f32 to vector<2x1x8x256xf32>
    %289 = arith.maximumf %287, %288 : vector<2x1x8x256xf32>
    %cst_132 = arith.constant dense<0.000000e+00> : vector<2x1x8xf32>
    %290 = vector.multi_reduction <add>, %289, %cst_132 [3] : vector<2x1x8x256xf32> to vector<2x1x8xf32>
    %291 = vector.shape_cast %290 : vector<2x1x8xf32> to vector<2x1x8x1xf32>
    %cst_133 = arith.constant 2.560000e+02 : f32
    %292 = vector.broadcast %cst_133 : f32 to vector<2x1x8x1xf32>
    %293 = arith.divf %291, %292 : vector<2x1x8x1xf32>
    %cst_134 = arith.constant dense<0xFF800000> : vector<2x1x8xf32>
    %294 = vector.multi_reduction <maximumf>, %289, %cst_134 [3] : vector<2x1x8x256xf32> to vector<2x1x8xf32>
    %295 = vector.shape_cast %294 : vector<2x1x8xf32> to vector<2x1x8x1xf32>
    %c5_135 = arith.constant 5 : index
    %c7_136 = arith.constant 7 : index
    %296 = memref.load %arg3[%c5_135, %c7_136] : memref<8x16xf32, #tpu.memory_space<smem>>
    %297 = vector.broadcast %296 : f32 to vector<2x1x8x1xf32>
    %298 = arith.mulf %293, %297 : vector<2x1x8x1xf32>
    %c6_137 = arith.constant 6 : index
    %c7_138 = arith.constant 7 : index
    %299 = memref.load %arg3[%c6_137, %c7_138] : memref<8x16xf32, #tpu.memory_space<smem>>
    %300 = vector.broadcast %299 : f32 to vector<2x1x8x1xf32>
    %301 = arith.mulf %295, %300 : vector<2x1x8x1xf32>
    %302 = arith.addf %298, %301 : vector<2x1x8x1xf32>
    %303 = arith.addf %265, %302 : vector<2x1x8x1xf32>
    %304 = vector.extract_strided_slice %0 {offsets = [0, 0, 0, 0], sizes = [2, 1, 8, 256], strides = [1, 1, 1, 1]} : vector<2x4x8x256xf32> to vector<2x1x8x256xf32>
    %c0_139 = arith.constant 0 : index
    %c8 = arith.constant 8 : index
    %305 = memref.load %arg3[%c0_139, %c8] : memref<8x16xf32, #tpu.memory_space<smem>>
    %306 = vector.broadcast %305 : f32 to vector<2x1x8x256xf32>
    %307 = arith.mulf %304, %306 : vector<2x1x8x256xf32>
    %308 = vector.extract_strided_slice %0 {offsets = [0, 1, 0, 0], sizes = [2, 1, 8, 256], strides = [1, 1, 1, 1]} : vector<2x4x8x256xf32> to vector<2x1x8x256xf32>
    %c1_140 = arith.constant 1 : index
    %c8_141 = arith.constant 8 : index
    %309 = memref.load %arg3[%c1_140, %c8_141] : memref<8x16xf32, #tpu.memory_space<smem>>
    %310 = vector.broadcast %309 : f32 to vector<2x1x8x256xf32>
    %311 = arith.mulf %308, %310 : vector<2x1x8x256xf32>
    %312 = arith.addf %307, %311 : vector<2x1x8x256xf32>
    %313 = vector.extract_strided_slice %0 {offsets = [0, 2, 0, 0], sizes = [2, 1, 8, 256], strides = [1, 1, 1, 1]} : vector<2x4x8x256xf32> to vector<2x1x8x256xf32>
    %c2_142 = arith.constant 2 : index
    %c8_143 = arith.constant 8 : index
    %314 = memref.load %arg3[%c2_142, %c8_143] : memref<8x16xf32, #tpu.memory_space<smem>>
    %315 = vector.broadcast %314 : f32 to vector<2x1x8x256xf32>
    %316 = arith.mulf %313, %315 : vector<2x1x8x256xf32>
    %317 = arith.addf %312, %316 : vector<2x1x8x256xf32>
    %318 = vector.extract_strided_slice %0 {offsets = [0, 3, 0, 0], sizes = [2, 1, 8, 256], strides = [1, 1, 1, 1]} : vector<2x4x8x256xf32> to vector<2x1x8x256xf32>
    %c3_144 = arith.constant 3 : index
    %c8_145 = arith.constant 8 : index
    %319 = memref.load %arg3[%c3_144, %c8_145] : memref<8x16xf32, #tpu.memory_space<smem>>
    %320 = vector.broadcast %319 : f32 to vector<2x1x8x256xf32>
    %321 = arith.mulf %318, %320 : vector<2x1x8x256xf32>
    %322 = arith.addf %317, %321 : vector<2x1x8x256xf32>
    %c4_146 = arith.constant 4 : index
    %c8_147 = arith.constant 8 : index
    %323 = memref.load %arg3[%c4_146, %c8_147] : memref<8x16xf32, #tpu.memory_space<smem>>
    %324 = vector.broadcast %323 : f32 to vector<2x1x8x256xf32>
    %325 = arith.addf %322, %324 : vector<2x1x8x256xf32>
    %cst_148 = arith.constant 0.000000e+00 : f32
    %326 = vector.broadcast %cst_148 : f32 to vector<2x1x8x256xf32>
    %327 = arith.maximumf %325, %326 : vector<2x1x8x256xf32>
    %cst_149 = arith.constant dense<0.000000e+00> : vector<2x1x8xf32>
    %328 = vector.multi_reduction <add>, %327, %cst_149 [3] : vector<2x1x8x256xf32> to vector<2x1x8xf32>
    %329 = vector.shape_cast %328 : vector<2x1x8xf32> to vector<2x1x8x1xf32>
    %cst_150 = arith.constant 2.560000e+02 : f32
    %330 = vector.broadcast %cst_150 : f32 to vector<2x1x8x1xf32>
    %331 = arith.divf %329, %330 : vector<2x1x8x1xf32>
    %cst_151 = arith.constant dense<0xFF800000> : vector<2x1x8xf32>
    %332 = vector.multi_reduction <maximumf>, %327, %cst_151 [3] : vector<2x1x8x256xf32> to vector<2x1x8xf32>
    %333 = vector.shape_cast %332 : vector<2x1x8xf32> to vector<2x1x8x1xf32>
    %c5_152 = arith.constant 5 : index
    %c8_153 = arith.constant 8 : index
    %334 = memref.load %arg3[%c5_152, %c8_153] : memref<8x16xf32, #tpu.memory_space<smem>>
    %335 = vector.broadcast %334 : f32 to vector<2x1x8x1xf32>
    %336 = arith.mulf %331, %335 : vector<2x1x8x1xf32>
    %c6_154 = arith.constant 6 : index
    %c8_155 = arith.constant 8 : index
    %337 = memref.load %arg3[%c6_154, %c8_155] : memref<8x16xf32, #tpu.memory_space<smem>>
    %338 = vector.broadcast %337 : f32 to vector<2x1x8x1xf32>
    %339 = arith.mulf %333, %338 : vector<2x1x8x1xf32>
    %340 = arith.addf %336, %339 : vector<2x1x8x1xf32>
    %341 = arith.addf %303, %340 : vector<2x1x8x1xf32>
    %342 = vector.extract_strided_slice %0 {offsets = [0, 0, 0, 0], sizes = [2, 1, 8, 256], strides = [1, 1, 1, 1]} : vector<2x4x8x256xf32> to vector<2x1x8x256xf32>
    %c0_156 = arith.constant 0 : index
    %c9 = arith.constant 9 : index
    %343 = memref.load %arg3[%c0_156, %c9] : memref<8x16xf32, #tpu.memory_space<smem>>
    %344 = vector.broadcast %343 : f32 to vector<2x1x8x256xf32>
    %345 = arith.mulf %342, %344 : vector<2x1x8x256xf32>
    %346 = vector.extract_strided_slice %0 {offsets = [0, 1, 0, 0], sizes = [2, 1, 8, 256], strides = [1, 1, 1, 1]} : vector<2x4x8x256xf32> to vector<2x1x8x256xf32>
    %c1_157 = arith.constant 1 : index
    %c9_158 = arith.constant 9 : index
    %347 = memref.load %arg3[%c1_157, %c9_158] : memref<8x16xf32, #tpu.memory_space<smem>>
    %348 = vector.broadcast %347 : f32 to vector<2x1x8x256xf32>
    %349 = arith.mulf %346, %348 : vector<2x1x8x256xf32>
    %350 = arith.addf %345, %349 : vector<2x1x8x256xf32>
    %351 = vector.extract_strided_slice %0 {offsets = [0, 2, 0, 0], sizes = [2, 1, 8, 256], strides = [1, 1, 1, 1]} : vector<2x4x8x256xf32> to vector<2x1x8x256xf32>
    %c2_159 = arith.constant 2 : index
    %c9_160 = arith.constant 9 : index
    %352 = memref.load %arg3[%c2_159, %c9_160] : memref<8x16xf32, #tpu.memory_space<smem>>
    %353 = vector.broadcast %352 : f32 to vector<2x1x8x256xf32>
    %354 = arith.mulf %351, %353 : vector<2x1x8x256xf32>
    %355 = arith.addf %350, %354 : vector<2x1x8x256xf32>
    %356 = vector.extract_strided_slice %0 {offsets = [0, 3, 0, 0], sizes = [2, 1, 8, 256], strides = [1, 1, 1, 1]} : vector<2x4x8x256xf32> to vector<2x1x8x256xf32>
    %c3_161 = arith.constant 3 : index
    %c9_162 = arith.constant 9 : index
    %357 = memref.load %arg3[%c3_161, %c9_162] : memref<8x16xf32, #tpu.memory_space<smem>>
    %358 = vector.broadcast %357 : f32 to vector<2x1x8x256xf32>
    %359 = arith.mulf %356, %358 : vector<2x1x8x256xf32>
    %360 = arith.addf %355, %359 : vector<2x1x8x256xf32>
    %c4_163 = arith.constant 4 : index
    %c9_164 = arith.constant 9 : index
    %361 = memref.load %arg3[%c4_163, %c9_164] : memref<8x16xf32, #tpu.memory_space<smem>>
    %362 = vector.broadcast %361 : f32 to vector<2x1x8x256xf32>
    %363 = arith.addf %360, %362 : vector<2x1x8x256xf32>
    %cst_165 = arith.constant 0.000000e+00 : f32
    %364 = vector.broadcast %cst_165 : f32 to vector<2x1x8x256xf32>
    %365 = arith.maximumf %363, %364 : vector<2x1x8x256xf32>
    %cst_166 = arith.constant dense<0.000000e+00> : vector<2x1x8xf32>
    %366 = vector.multi_reduction <add>, %365, %cst_166 [3] : vector<2x1x8x256xf32> to vector<2x1x8xf32>
    %367 = vector.shape_cast %366 : vector<2x1x8xf32> to vector<2x1x8x1xf32>
    %cst_167 = arith.constant 2.560000e+02 : f32
    %368 = vector.broadcast %cst_167 : f32 to vector<2x1x8x1xf32>
    %369 = arith.divf %367, %368 : vector<2x1x8x1xf32>
    %cst_168 = arith.constant dense<0xFF800000> : vector<2x1x8xf32>
    %370 = vector.multi_reduction <maximumf>, %365, %cst_168 [3] : vector<2x1x8x256xf32> to vector<2x1x8xf32>
    %371 = vector.shape_cast %370 : vector<2x1x8xf32> to vector<2x1x8x1xf32>
    %c5_169 = arith.constant 5 : index
    %c9_170 = arith.constant 9 : index
    %372 = memref.load %arg3[%c5_169, %c9_170] : memref<8x16xf32, #tpu.memory_space<smem>>
    %373 = vector.broadcast %372 : f32 to vector<2x1x8x1xf32>
    %374 = arith.mulf %369, %373 : vector<2x1x8x1xf32>
    %c6_171 = arith.constant 6 : index
    %c9_172 = arith.constant 9 : index
    %375 = memref.load %arg3[%c6_171, %c9_172] : memref<8x16xf32, #tpu.memory_space<smem>>
    %376 = vector.broadcast %375 : f32 to vector<2x1x8x1xf32>
    %377 = arith.mulf %371, %376 : vector<2x1x8x1xf32>
    %378 = arith.addf %374, %377 : vector<2x1x8x1xf32>
    %379 = arith.addf %341, %378 : vector<2x1x8x1xf32>
    %380 = vector.extract_strided_slice %0 {offsets = [0, 0, 0, 0], sizes = [2, 1, 8, 256], strides = [1, 1, 1, 1]} : vector<2x4x8x256xf32> to vector<2x1x8x256xf32>
    %c0_173 = arith.constant 0 : index
    %c10 = arith.constant 10 : index
    %381 = memref.load %arg3[%c0_173, %c10] : memref<8x16xf32, #tpu.memory_space<smem>>
    %382 = vector.broadcast %381 : f32 to vector<2x1x8x256xf32>
    %383 = arith.mulf %380, %382 : vector<2x1x8x256xf32>
    %384 = vector.extract_strided_slice %0 {offsets = [0, 1, 0, 0], sizes = [2, 1, 8, 256], strides = [1, 1, 1, 1]} : vector<2x4x8x256xf32> to vector<2x1x8x256xf32>
    %c1_174 = arith.constant 1 : index
    %c10_175 = arith.constant 10 : index
    %385 = memref.load %arg3[%c1_174, %c10_175] : memref<8x16xf32, #tpu.memory_space<smem>>
    %386 = vector.broadcast %385 : f32 to vector<2x1x8x256xf32>
    %387 = arith.mulf %384, %386 : vector<2x1x8x256xf32>
    %388 = arith.addf %383, %387 : vector<2x1x8x256xf32>
    %389 = vector.extract_strided_slice %0 {offsets = [0, 2, 0, 0], sizes = [2, 1, 8, 256], strides = [1, 1, 1, 1]} : vector<2x4x8x256xf32> to vector<2x1x8x256xf32>
    %c2_176 = arith.constant 2 : index
    %c10_177 = arith.constant 10 : index
    %390 = memref.load %arg3[%c2_176, %c10_177] : memref<8x16xf32, #tpu.memory_space<smem>>
    %391 = vector.broadcast %390 : f32 to vector<2x1x8x256xf32>
    %392 = arith.mulf %389, %391 : vector<2x1x8x256xf32>
    %393 = arith.addf %388, %392 : vector<2x1x8x256xf32>
    %394 = vector.extract_strided_slice %0 {offsets = [0, 3, 0, 0], sizes = [2, 1, 8, 256], strides = [1, 1, 1, 1]} : vector<2x4x8x256xf32> to vector<2x1x8x256xf32>
    %c3_178 = arith.constant 3 : index
    %c10_179 = arith.constant 10 : index
    %395 = memref.load %arg3[%c3_178, %c10_179] : memref<8x16xf32, #tpu.memory_space<smem>>
    %396 = vector.broadcast %395 : f32 to vector<2x1x8x256xf32>
    %397 = arith.mulf %394, %396 : vector<2x1x8x256xf32>
    %398 = arith.addf %393, %397 : vector<2x1x8x256xf32>
    %c4_180 = arith.constant 4 : index
    %c10_181 = arith.constant 10 : index
    %399 = memref.load %arg3[%c4_180, %c10_181] : memref<8x16xf32, #tpu.memory_space<smem>>
    %400 = vector.broadcast %399 : f32 to vector<2x1x8x256xf32>
    %401 = arith.addf %398, %400 : vector<2x1x8x256xf32>
    %cst_182 = arith.constant 0.000000e+00 : f32
    %402 = vector.broadcast %cst_182 : f32 to vector<2x1x8x256xf32>
    %403 = arith.maximumf %401, %402 : vector<2x1x8x256xf32>
    %cst_183 = arith.constant dense<0.000000e+00> : vector<2x1x8xf32>
    %404 = vector.multi_reduction <add>, %403, %cst_183 [3] : vector<2x1x8x256xf32> to vector<2x1x8xf32>
    %405 = vector.shape_cast %404 : vector<2x1x8xf32> to vector<2x1x8x1xf32>
    %cst_184 = arith.constant 2.560000e+02 : f32
    %406 = vector.broadcast %cst_184 : f32 to vector<2x1x8x1xf32>
    %407 = arith.divf %405, %406 : vector<2x1x8x1xf32>
    %cst_185 = arith.constant dense<0xFF800000> : vector<2x1x8xf32>
    %408 = vector.multi_reduction <maximumf>, %403, %cst_185 [3] : vector<2x1x8x256xf32> to vector<2x1x8xf32>
    %409 = vector.shape_cast %408 : vector<2x1x8xf32> to vector<2x1x8x1xf32>
    %c5_186 = arith.constant 5 : index
    %c10_187 = arith.constant 10 : index
    %410 = memref.load %arg3[%c5_186, %c10_187] : memref<8x16xf32, #tpu.memory_space<smem>>
    %411 = vector.broadcast %410 : f32 to vector<2x1x8x1xf32>
    %412 = arith.mulf %407, %411 : vector<2x1x8x1xf32>
    %c6_188 = arith.constant 6 : index
    %c10_189 = arith.constant 10 : index
    %413 = memref.load %arg3[%c6_188, %c10_189] : memref<8x16xf32, #tpu.memory_space<smem>>
    %414 = vector.broadcast %413 : f32 to vector<2x1x8x1xf32>
    %415 = arith.mulf %409, %414 : vector<2x1x8x1xf32>
    %416 = arith.addf %412, %415 : vector<2x1x8x1xf32>
    %417 = arith.addf %379, %416 : vector<2x1x8x1xf32>
    %418 = vector.extract_strided_slice %0 {offsets = [0, 0, 0, 0], sizes = [2, 1, 8, 256], strides = [1, 1, 1, 1]} : vector<2x4x8x256xf32> to vector<2x1x8x256xf32>
    %c0_190 = arith.constant 0 : index
    %c11 = arith.constant 11 : index
    %419 = memref.load %arg3[%c0_190, %c11] : memref<8x16xf32, #tpu.memory_space<smem>>
    %420 = vector.broadcast %419 : f32 to vector<2x1x8x256xf32>
    %421 = arith.mulf %418, %420 : vector<2x1x8x256xf32>
    %422 = vector.extract_strided_slice %0 {offsets = [0, 1, 0, 0], sizes = [2, 1, 8, 256], strides = [1, 1, 1, 1]} : vector<2x4x8x256xf32> to vector<2x1x8x256xf32>
    %c1_191 = arith.constant 1 : index
    %c11_192 = arith.constant 11 : index
    %423 = memref.load %arg3[%c1_191, %c11_192] : memref<8x16xf32, #tpu.memory_space<smem>>
    %424 = vector.broadcast %423 : f32 to vector<2x1x8x256xf32>
    %425 = arith.mulf %422, %424 : vector<2x1x8x256xf32>
    %426 = arith.addf %421, %425 : vector<2x1x8x256xf32>
    %427 = vector.extract_strided_slice %0 {offsets = [0, 2, 0, 0], sizes = [2, 1, 8, 256], strides = [1, 1, 1, 1]} : vector<2x4x8x256xf32> to vector<2x1x8x256xf32>
    %c2_193 = arith.constant 2 : index
    %c11_194 = arith.constant 11 : index
    %428 = memref.load %arg3[%c2_193, %c11_194] : memref<8x16xf32, #tpu.memory_space<smem>>
    %429 = vector.broadcast %428 : f32 to vector<2x1x8x256xf32>
    %430 = arith.mulf %427, %429 : vector<2x1x8x256xf32>
    %431 = arith.addf %426, %430 : vector<2x1x8x256xf32>
    %432 = vector.extract_strided_slice %0 {offsets = [0, 3, 0, 0], sizes = [2, 1, 8, 256], strides = [1, 1, 1, 1]} : vector<2x4x8x256xf32> to vector<2x1x8x256xf32>
    %c3_195 = arith.constant 3 : index
    %c11_196 = arith.constant 11 : index
    %433 = memref.load %arg3[%c3_195, %c11_196] : memref<8x16xf32, #tpu.memory_space<smem>>
    %434 = vector.broadcast %433 : f32 to vector<2x1x8x256xf32>
    %435 = arith.mulf %432, %434 : vector<2x1x8x256xf32>
    %436 = arith.addf %431, %435 : vector<2x1x8x256xf32>
    %c4_197 = arith.constant 4 : index
    %c11_198 = arith.constant 11 : index
    %437 = memref.load %arg3[%c4_197, %c11_198] : memref<8x16xf32, #tpu.memory_space<smem>>
    %438 = vector.broadcast %437 : f32 to vector<2x1x8x256xf32>
    %439 = arith.addf %436, %438 : vector<2x1x8x256xf32>
    %cst_199 = arith.constant 0.000000e+00 : f32
    %440 = vector.broadcast %cst_199 : f32 to vector<2x1x8x256xf32>
    %441 = arith.maximumf %439, %440 : vector<2x1x8x256xf32>
    %cst_200 = arith.constant dense<0.000000e+00> : vector<2x1x8xf32>
    %442 = vector.multi_reduction <add>, %441, %cst_200 [3] : vector<2x1x8x256xf32> to vector<2x1x8xf32>
    %443 = vector.shape_cast %442 : vector<2x1x8xf32> to vector<2x1x8x1xf32>
    %cst_201 = arith.constant 2.560000e+02 : f32
    %444 = vector.broadcast %cst_201 : f32 to vector<2x1x8x1xf32>
    %445 = arith.divf %443, %444 : vector<2x1x8x1xf32>
    %cst_202 = arith.constant dense<0xFF800000> : vector<2x1x8xf32>
    %446 = vector.multi_reduction <maximumf>, %441, %cst_202 [3] : vector<2x1x8x256xf32> to vector<2x1x8xf32>
    %447 = vector.shape_cast %446 : vector<2x1x8xf32> to vector<2x1x8x1xf32>
    %c5_203 = arith.constant 5 : index
    %c11_204 = arith.constant 11 : index
    %448 = memref.load %arg3[%c5_203, %c11_204] : memref<8x16xf32, #tpu.memory_space<smem>>
    %449 = vector.broadcast %448 : f32 to vector<2x1x8x1xf32>
    %450 = arith.mulf %445, %449 : vector<2x1x8x1xf32>
    %c6_205 = arith.constant 6 : index
    %c11_206 = arith.constant 11 : index
    %451 = memref.load %arg3[%c6_205, %c11_206] : memref<8x16xf32, #tpu.memory_space<smem>>
    %452 = vector.broadcast %451 : f32 to vector<2x1x8x1xf32>
    %453 = arith.mulf %447, %452 : vector<2x1x8x1xf32>
    %454 = arith.addf %450, %453 : vector<2x1x8x1xf32>
    %455 = arith.addf %417, %454 : vector<2x1x8x1xf32>
    %456 = vector.extract_strided_slice %0 {offsets = [0, 0, 0, 0], sizes = [2, 1, 8, 256], strides = [1, 1, 1, 1]} : vector<2x4x8x256xf32> to vector<2x1x8x256xf32>
    %c0_207 = arith.constant 0 : index
    %c12 = arith.constant 12 : index
    %457 = memref.load %arg3[%c0_207, %c12] : memref<8x16xf32, #tpu.memory_space<smem>>
    %458 = vector.broadcast %457 : f32 to vector<2x1x8x256xf32>
    %459 = arith.mulf %456, %458 : vector<2x1x8x256xf32>
    %460 = vector.extract_strided_slice %0 {offsets = [0, 1, 0, 0], sizes = [2, 1, 8, 256], strides = [1, 1, 1, 1]} : vector<2x4x8x256xf32> to vector<2x1x8x256xf32>
    %c1_208 = arith.constant 1 : index
    %c12_209 = arith.constant 12 : index
    %461 = memref.load %arg3[%c1_208, %c12_209] : memref<8x16xf32, #tpu.memory_space<smem>>
    %462 = vector.broadcast %461 : f32 to vector<2x1x8x256xf32>
    %463 = arith.mulf %460, %462 : vector<2x1x8x256xf32>
    %464 = arith.addf %459, %463 : vector<2x1x8x256xf32>
    %465 = vector.extract_strided_slice %0 {offsets = [0, 2, 0, 0], sizes = [2, 1, 8, 256], strides = [1, 1, 1, 1]} : vector<2x4x8x256xf32> to vector<2x1x8x256xf32>
    %c2_210 = arith.constant 2 : index
    %c12_211 = arith.constant 12 : index
    %466 = memref.load %arg3[%c2_210, %c12_211] : memref<8x16xf32, #tpu.memory_space<smem>>
    %467 = vector.broadcast %466 : f32 to vector<2x1x8x256xf32>
    %468 = arith.mulf %465, %467 : vector<2x1x8x256xf32>
    %469 = arith.addf %464, %468 : vector<2x1x8x256xf32>
    %470 = vector.extract_strided_slice %0 {offsets = [0, 3, 0, 0], sizes = [2, 1, 8, 256], strides = [1, 1, 1, 1]} : vector<2x4x8x256xf32> to vector<2x1x8x256xf32>
    %c3_212 = arith.constant 3 : index
    %c12_213 = arith.constant 12 : index
    %471 = memref.load %arg3[%c3_212, %c12_213] : memref<8x16xf32, #tpu.memory_space<smem>>
    %472 = vector.broadcast %471 : f32 to vector<2x1x8x256xf32>
    %473 = arith.mulf %470, %472 : vector<2x1x8x256xf32>
    %474 = arith.addf %469, %473 : vector<2x1x8x256xf32>
    %c4_214 = arith.constant 4 : index
    %c12_215 = arith.constant 12 : index
    %475 = memref.load %arg3[%c4_214, %c12_215] : memref<8x16xf32, #tpu.memory_space<smem>>
    %476 = vector.broadcast %475 : f32 to vector<2x1x8x256xf32>
    %477 = arith.addf %474, %476 : vector<2x1x8x256xf32>
    %cst_216 = arith.constant 0.000000e+00 : f32
    %478 = vector.broadcast %cst_216 : f32 to vector<2x1x8x256xf32>
    %479 = arith.maximumf %477, %478 : vector<2x1x8x256xf32>
    %cst_217 = arith.constant dense<0.000000e+00> : vector<2x1x8xf32>
    %480 = vector.multi_reduction <add>, %479, %cst_217 [3] : vector<2x1x8x256xf32> to vector<2x1x8xf32>
    %481 = vector.shape_cast %480 : vector<2x1x8xf32> to vector<2x1x8x1xf32>
    %cst_218 = arith.constant 2.560000e+02 : f32
    %482 = vector.broadcast %cst_218 : f32 to vector<2x1x8x1xf32>
    %483 = arith.divf %481, %482 : vector<2x1x8x1xf32>
    %cst_219 = arith.constant dense<0xFF800000> : vector<2x1x8xf32>
    %484 = vector.multi_reduction <maximumf>, %479, %cst_219 [3] : vector<2x1x8x256xf32> to vector<2x1x8xf32>
    %485 = vector.shape_cast %484 : vector<2x1x8xf32> to vector<2x1x8x1xf32>
    %c5_220 = arith.constant 5 : index
    %c12_221 = arith.constant 12 : index
    %486 = memref.load %arg3[%c5_220, %c12_221] : memref<8x16xf32, #tpu.memory_space<smem>>
    %487 = vector.broadcast %486 : f32 to vector<2x1x8x1xf32>
    %488 = arith.mulf %483, %487 : vector<2x1x8x1xf32>
    %c6_222 = arith.constant 6 : index
    %c12_223 = arith.constant 12 : index
    %489 = memref.load %arg3[%c6_222, %c12_223] : memref<8x16xf32, #tpu.memory_space<smem>>
    %490 = vector.broadcast %489 : f32 to vector<2x1x8x1xf32>
    %491 = arith.mulf %485, %490 : vector<2x1x8x1xf32>
    %492 = arith.addf %488, %491 : vector<2x1x8x1xf32>
    %493 = arith.addf %455, %492 : vector<2x1x8x1xf32>
    %494 = vector.extract_strided_slice %0 {offsets = [0, 0, 0, 0], sizes = [2, 1, 8, 256], strides = [1, 1, 1, 1]} : vector<2x4x8x256xf32> to vector<2x1x8x256xf32>
    %c0_224 = arith.constant 0 : index
    %c13 = arith.constant 13 : index
    %495 = memref.load %arg3[%c0_224, %c13] : memref<8x16xf32, #tpu.memory_space<smem>>
    %496 = vector.broadcast %495 : f32 to vector<2x1x8x256xf32>
    %497 = arith.mulf %494, %496 : vector<2x1x8x256xf32>
    %498 = vector.extract_strided_slice %0 {offsets = [0, 1, 0, 0], sizes = [2, 1, 8, 256], strides = [1, 1, 1, 1]} : vector<2x4x8x256xf32> to vector<2x1x8x256xf32>
    %c1_225 = arith.constant 1 : index
    %c13_226 = arith.constant 13 : index
    %499 = memref.load %arg3[%c1_225, %c13_226] : memref<8x16xf32, #tpu.memory_space<smem>>
    %500 = vector.broadcast %499 : f32 to vector<2x1x8x256xf32>
    %501 = arith.mulf %498, %500 : vector<2x1x8x256xf32>
    %502 = arith.addf %497, %501 : vector<2x1x8x256xf32>
    %503 = vector.extract_strided_slice %0 {offsets = [0, 2, 0, 0], sizes = [2, 1, 8, 256], strides = [1, 1, 1, 1]} : vector<2x4x8x256xf32> to vector<2x1x8x256xf32>
    %c2_227 = arith.constant 2 : index
    %c13_228 = arith.constant 13 : index
    %504 = memref.load %arg3[%c2_227, %c13_228] : memref<8x16xf32, #tpu.memory_space<smem>>
    %505 = vector.broadcast %504 : f32 to vector<2x1x8x256xf32>
    %506 = arith.mulf %503, %505 : vector<2x1x8x256xf32>
    %507 = arith.addf %502, %506 : vector<2x1x8x256xf32>
    %508 = vector.extract_strided_slice %0 {offsets = [0, 3, 0, 0], sizes = [2, 1, 8, 256], strides = [1, 1, 1, 1]} : vector<2x4x8x256xf32> to vector<2x1x8x256xf32>
    %c3_229 = arith.constant 3 : index
    %c13_230 = arith.constant 13 : index
    %509 = memref.load %arg3[%c3_229, %c13_230] : memref<8x16xf32, #tpu.memory_space<smem>>
    %510 = vector.broadcast %509 : f32 to vector<2x1x8x256xf32>
    %511 = arith.mulf %508, %510 : vector<2x1x8x256xf32>
    %512 = arith.addf %507, %511 : vector<2x1x8x256xf32>
    %c4_231 = arith.constant 4 : index
    %c13_232 = arith.constant 13 : index
    %513 = memref.load %arg3[%c4_231, %c13_232] : memref<8x16xf32, #tpu.memory_space<smem>>
    %514 = vector.broadcast %513 : f32 to vector<2x1x8x256xf32>
    %515 = arith.addf %512, %514 : vector<2x1x8x256xf32>
    %cst_233 = arith.constant 0.000000e+00 : f32
    %516 = vector.broadcast %cst_233 : f32 to vector<2x1x8x256xf32>
    %517 = arith.maximumf %515, %516 : vector<2x1x8x256xf32>
    %cst_234 = arith.constant dense<0.000000e+00> : vector<2x1x8xf32>
    %518 = vector.multi_reduction <add>, %517, %cst_234 [3] : vector<2x1x8x256xf32> to vector<2x1x8xf32>
    %519 = vector.shape_cast %518 : vector<2x1x8xf32> to vector<2x1x8x1xf32>
    %cst_235 = arith.constant 2.560000e+02 : f32
    %520 = vector.broadcast %cst_235 : f32 to vector<2x1x8x1xf32>
    %521 = arith.divf %519, %520 : vector<2x1x8x1xf32>
    %cst_236 = arith.constant dense<0xFF800000> : vector<2x1x8xf32>
    %522 = vector.multi_reduction <maximumf>, %517, %cst_236 [3] : vector<2x1x8x256xf32> to vector<2x1x8xf32>
    %523 = vector.shape_cast %522 : vector<2x1x8xf32> to vector<2x1x8x1xf32>
    %c5_237 = arith.constant 5 : index
    %c13_238 = arith.constant 13 : index
    %524 = memref.load %arg3[%c5_237, %c13_238] : memref<8x16xf32, #tpu.memory_space<smem>>
    %525 = vector.broadcast %524 : f32 to vector<2x1x8x1xf32>
    %526 = arith.mulf %521, %525 : vector<2x1x8x1xf32>
    %c6_239 = arith.constant 6 : index
    %c13_240 = arith.constant 13 : index
    %527 = memref.load %arg3[%c6_239, %c13_240] : memref<8x16xf32, #tpu.memory_space<smem>>
    %528 = vector.broadcast %527 : f32 to vector<2x1x8x1xf32>
    %529 = arith.mulf %523, %528 : vector<2x1x8x1xf32>
    %530 = arith.addf %526, %529 : vector<2x1x8x1xf32>
    %531 = arith.addf %493, %530 : vector<2x1x8x1xf32>
    %532 = vector.extract_strided_slice %0 {offsets = [0, 0, 0, 0], sizes = [2, 1, 8, 256], strides = [1, 1, 1, 1]} : vector<2x4x8x256xf32> to vector<2x1x8x256xf32>
    %c0_241 = arith.constant 0 : index
    %c14 = arith.constant 14 : index
    %533 = memref.load %arg3[%c0_241, %c14] : memref<8x16xf32, #tpu.memory_space<smem>>
    %534 = vector.broadcast %533 : f32 to vector<2x1x8x256xf32>
    %535 = arith.mulf %532, %534 : vector<2x1x8x256xf32>
    %536 = vector.extract_strided_slice %0 {offsets = [0, 1, 0, 0], sizes = [2, 1, 8, 256], strides = [1, 1, 1, 1]} : vector<2x4x8x256xf32> to vector<2x1x8x256xf32>
    %c1_242 = arith.constant 1 : index
    %c14_243 = arith.constant 14 : index
    %537 = memref.load %arg3[%c1_242, %c14_243] : memref<8x16xf32, #tpu.memory_space<smem>>
    %538 = vector.broadcast %537 : f32 to vector<2x1x8x256xf32>
    %539 = arith.mulf %536, %538 : vector<2x1x8x256xf32>
    %540 = arith.addf %535, %539 : vector<2x1x8x256xf32>
    %541 = vector.extract_strided_slice %0 {offsets = [0, 2, 0, 0], sizes = [2, 1, 8, 256], strides = [1, 1, 1, 1]} : vector<2x4x8x256xf32> to vector<2x1x8x256xf32>
    %c2_244 = arith.constant 2 : index
    %c14_245 = arith.constant 14 : index
    %542 = memref.load %arg3[%c2_244, %c14_245] : memref<8x16xf32, #tpu.memory_space<smem>>
    %543 = vector.broadcast %542 : f32 to vector<2x1x8x256xf32>
    %544 = arith.mulf %541, %543 : vector<2x1x8x256xf32>
    %545 = arith.addf %540, %544 : vector<2x1x8x256xf32>
    %546 = vector.extract_strided_slice %0 {offsets = [0, 3, 0, 0], sizes = [2, 1, 8, 256], strides = [1, 1, 1, 1]} : vector<2x4x8x256xf32> to vector<2x1x8x256xf32>
    %c3_246 = arith.constant 3 : index
    %c14_247 = arith.constant 14 : index
    %547 = memref.load %arg3[%c3_246, %c14_247] : memref<8x16xf32, #tpu.memory_space<smem>>
    %548 = vector.broadcast %547 : f32 to vector<2x1x8x256xf32>
    %549 = arith.mulf %546, %548 : vector<2x1x8x256xf32>
    %550 = arith.addf %545, %549 : vector<2x1x8x256xf32>
    %c4_248 = arith.constant 4 : index
    %c14_249 = arith.constant 14 : index
    %551 = memref.load %arg3[%c4_248, %c14_249] : memref<8x16xf32, #tpu.memory_space<smem>>
    %552 = vector.broadcast %551 : f32 to vector<2x1x8x256xf32>
    %553 = arith.addf %550, %552 : vector<2x1x8x256xf32>
    %cst_250 = arith.constant 0.000000e+00 : f32
    %554 = vector.broadcast %cst_250 : f32 to vector<2x1x8x256xf32>
    %555 = arith.maximumf %553, %554 : vector<2x1x8x256xf32>
    %cst_251 = arith.constant dense<0.000000e+00> : vector<2x1x8xf32>
    %556 = vector.multi_reduction <add>, %555, %cst_251 [3] : vector<2x1x8x256xf32> to vector<2x1x8xf32>
    %557 = vector.shape_cast %556 : vector<2x1x8xf32> to vector<2x1x8x1xf32>
    %cst_252 = arith.constant 2.560000e+02 : f32
    %558 = vector.broadcast %cst_252 : f32 to vector<2x1x8x1xf32>
    %559 = arith.divf %557, %558 : vector<2x1x8x1xf32>
    %cst_253 = arith.constant dense<0xFF800000> : vector<2x1x8xf32>
    %560 = vector.multi_reduction <maximumf>, %555, %cst_253 [3] : vector<2x1x8x256xf32> to vector<2x1x8xf32>
    %561 = vector.shape_cast %560 : vector<2x1x8xf32> to vector<2x1x8x1xf32>
    %c5_254 = arith.constant 5 : index
    %c14_255 = arith.constant 14 : index
    %562 = memref.load %arg3[%c5_254, %c14_255] : memref<8x16xf32, #tpu.memory_space<smem>>
    %563 = vector.broadcast %562 : f32 to vector<2x1x8x1xf32>
    %564 = arith.mulf %559, %563 : vector<2x1x8x1xf32>
    %c6_256 = arith.constant 6 : index
    %c14_257 = arith.constant 14 : index
    %565 = memref.load %arg3[%c6_256, %c14_257] : memref<8x16xf32, #tpu.memory_space<smem>>
    %566 = vector.broadcast %565 : f32 to vector<2x1x8x1xf32>
    %567 = arith.mulf %561, %566 : vector<2x1x8x1xf32>
    %568 = arith.addf %564, %567 : vector<2x1x8x1xf32>
    %569 = arith.addf %531, %568 : vector<2x1x8x1xf32>
    %570 = vector.extract_strided_slice %0 {offsets = [0, 0, 0, 0], sizes = [2, 1, 8, 256], strides = [1, 1, 1, 1]} : vector<2x4x8x256xf32> to vector<2x1x8x256xf32>
    %c0_258 = arith.constant 0 : index
    %c15 = arith.constant 15 : index
    %571 = memref.load %arg3[%c0_258, %c15] : memref<8x16xf32, #tpu.memory_space<smem>>
    %572 = vector.broadcast %571 : f32 to vector<2x1x8x256xf32>
    %573 = arith.mulf %570, %572 : vector<2x1x8x256xf32>
    %574 = vector.extract_strided_slice %0 {offsets = [0, 1, 0, 0], sizes = [2, 1, 8, 256], strides = [1, 1, 1, 1]} : vector<2x4x8x256xf32> to vector<2x1x8x256xf32>
    %c1_259 = arith.constant 1 : index
    %c15_260 = arith.constant 15 : index
    %575 = memref.load %arg3[%c1_259, %c15_260] : memref<8x16xf32, #tpu.memory_space<smem>>
    %576 = vector.broadcast %575 : f32 to vector<2x1x8x256xf32>
    %577 = arith.mulf %574, %576 : vector<2x1x8x256xf32>
    %578 = arith.addf %573, %577 : vector<2x1x8x256xf32>
    %579 = vector.extract_strided_slice %0 {offsets = [0, 2, 0, 0], sizes = [2, 1, 8, 256], strides = [1, 1, 1, 1]} : vector<2x4x8x256xf32> to vector<2x1x8x256xf32>
    %c2_261 = arith.constant 2 : index
    %c15_262 = arith.constant 15 : index
    %580 = memref.load %arg3[%c2_261, %c15_262] : memref<8x16xf32, #tpu.memory_space<smem>>
    %581 = vector.broadcast %580 : f32 to vector<2x1x8x256xf32>
    %582 = arith.mulf %579, %581 : vector<2x1x8x256xf32>
    %583 = arith.addf %578, %582 : vector<2x1x8x256xf32>
    %584 = vector.extract_strided_slice %0 {offsets = [0, 3, 0, 0], sizes = [2, 1, 8, 256], strides = [1, 1, 1, 1]} : vector<2x4x8x256xf32> to vector<2x1x8x256xf32>
    %c3_263 = arith.constant 3 : index
    %c15_264 = arith.constant 15 : index
    %585 = memref.load %arg3[%c3_263, %c15_264] : memref<8x16xf32, #tpu.memory_space<smem>>
    %586 = vector.broadcast %585 : f32 to vector<2x1x8x256xf32>
    %587 = arith.mulf %584, %586 : vector<2x1x8x256xf32>
    %588 = arith.addf %583, %587 : vector<2x1x8x256xf32>
    %c4_265 = arith.constant 4 : index
    %c15_266 = arith.constant 15 : index
    %589 = memref.load %arg3[%c4_265, %c15_266] : memref<8x16xf32, #tpu.memory_space<smem>>
    %590 = vector.broadcast %589 : f32 to vector<2x1x8x256xf32>
    %591 = arith.addf %588, %590 : vector<2x1x8x256xf32>
    %cst_267 = arith.constant 0.000000e+00 : f32
    %592 = vector.broadcast %cst_267 : f32 to vector<2x1x8x256xf32>
    %593 = arith.maximumf %591, %592 : vector<2x1x8x256xf32>
    %cst_268 = arith.constant dense<0.000000e+00> : vector<2x1x8xf32>
    %594 = vector.multi_reduction <add>, %593, %cst_268 [3] : vector<2x1x8x256xf32> to vector<2x1x8xf32>
    %595 = vector.shape_cast %594 : vector<2x1x8xf32> to vector<2x1x8x1xf32>
    %cst_269 = arith.constant 2.560000e+02 : f32
    %596 = vector.broadcast %cst_269 : f32 to vector<2x1x8x1xf32>
    %597 = arith.divf %595, %596 : vector<2x1x8x1xf32>
    %cst_270 = arith.constant dense<0xFF800000> : vector<2x1x8xf32>
    %598 = vector.multi_reduction <maximumf>, %593, %cst_270 [3] : vector<2x1x8x256xf32> to vector<2x1x8xf32>
    %599 = vector.shape_cast %598 : vector<2x1x8xf32> to vector<2x1x8x1xf32>
    %c5_271 = arith.constant 5 : index
    %c15_272 = arith.constant 15 : index
    %600 = memref.load %arg3[%c5_271, %c15_272] : memref<8x16xf32, #tpu.memory_space<smem>>
    %601 = vector.broadcast %600 : f32 to vector<2x1x8x1xf32>
    %602 = arith.mulf %597, %601 : vector<2x1x8x1xf32>
    %c6_273 = arith.constant 6 : index
    %c15_274 = arith.constant 15 : index
    %603 = memref.load %arg3[%c6_273, %c15_274] : memref<8x16xf32, #tpu.memory_space<smem>>
    %604 = vector.broadcast %603 : f32 to vector<2x1x8x1xf32>
    %605 = arith.mulf %599, %604 : vector<2x1x8x1xf32>
    %606 = arith.addf %602, %605 : vector<2x1x8x1xf32>
    %607 = arith.addf %569, %606 : vector<2x1x8x1xf32>
    %c7_275 = arith.constant 7 : index
    %c0_276 = arith.constant 0 : index
    %608 = memref.load %arg3[%c7_275, %c0_276] : memref<8x16xf32, #tpu.memory_space<smem>>
    %609 = vector.broadcast %608 : f32 to vector<2x1x8x1xf32>
    %610 = arith.addf %607, %609 : vector<2x1x8x1xf32>
    %611 = vector.shape_cast %610 : vector<2x1x8x1xf32> to vector<2x8x1xf32>
    %c0_277 = arith.constant 0 : index
    %c0_278 = arith.constant 0 : index
    %c0_279 = arith.constant 0 : index
    %612 = vector.load %arg6[%c0_277, %c0_278, %c0_279] : memref<2x8x1xf32, #tpu.memory_space<vmem>>, vector<2x8x1xf32>
    tpu.vector_store %arg6[%c0_277, %c0_278, %c0_279], %611 {strides = array<i32>} : memref<2x8x1xf32, #tpu.memory_space<vmem>>, vector<2x8x1xf32>,
    %c0_i32 = arith.constant 0 : i32
    %613 = arith.cmpi eq, %arg1, %c0_i32 : i32
    %614 = arith.extui %613 : i1 to i32
    %c0_i32_280 = arith.constant 0 : i32
    %615 = arith.cmpi ne, %614, %c0_i32_280 : i32
    scf.if %615 {
      %c0_281 = arith.constant 0 : index
      %c0_282 = arith.constant 0 : index
      %c0_283 = arith.constant 0 : index
      %616 = vector.load %arg6[%c0_281, %c0_282, %c0_283] : memref<2x8x1xf32, #tpu.memory_space<vmem>>, vector<2x8x1xf32>
      %617 = tpu.iota {dimensions = array<i32: 0>} : vector<8x8xi32>
      %618 = tpu.iota {dimensions = array<i32: 1>} : vector<8x8xi32>
      %619 = arith.cmpi eq, %617, %618 : vector<8x8xi32>
      %620 = arith.extui %619 : vector<8x8xi1> to vector<8x8xi32>
      %621 = arith.sitofp %620 : vector<8x8xi32> to vector<8x8xf32>
      %622 = vector.shape_cast %621 : vector<8x8xf32> to vector<1x8x8xf32>
      %623 = vector.broadcast %616 : vector<2x8x1xf32> to vector<2x8x8xf32>
      %624 = vector.broadcast %622 : vector<1x8x8xf32> to vector<2x8x8xf32>
      %625 = arith.mulf %623, %624 : vector<2x8x8xf32>
      %cst_284 = arith.constant dense<0.000000e+00> : vector<2x8xf32>
      %626 = vector.multi_reduction <add>, %625, %cst_284 [1] : vector<2x8x8xf32> to vector<2x8xf32>
      %627 = vector.shape_cast %626 : vector<2x8xf32> to vector<2x1x8xf32>
      %628 = vector.broadcast %627 : vector<2x1x8xf32> to vector<2x8x8xf32>
      %629 = vector.broadcast %616 : vector<2x8x1xf32> to vector<2x8x8xf32>
      %630 = arith.cmpf ogt, %628, %629 : vector<2x8x8xf32>
      %631 = vector.broadcast %627 : vector<2x1x8xf32> to vector<2x8x8xf32>
      %632 = vector.broadcast %616 : vector<2x8x1xf32> to vector<2x8x8xf32>
      %633 = arith.cmpf oeq, %631, %632 : vector<2x8x8xf32>
      %634 = vector.shape_cast %618 : vector<8x8xi32> to vector<1x8x8xi32>
      %635 = vector.shape_cast %617 : vector<8x8xi32> to vector<1x8x8xi32>
      %636 = arith.cmpi slt, %634, %635 : vector<1x8x8xi32>
      %637 = vector.broadcast %636 : vector<1x8x8xi1> to vector<2x8x8xi1>
      %638 = arith.andi %633, %637 : vector<2x8x8xi1>
      %639 = arith.ori %630, %638 : vector<2x8x8xi1>
      %640 = arith.extui %639 : vector<2x8x8xi1> to vector<2x8x8xi32>
      %cst_285 = arith.constant dense<0> : vector<2x8xi32>
      %641 = vector.multi_reduction <add>, %640, %cst_285 [2] : vector<2x8x8xi32> to vector<2x8xi32>
      %642 = vector.shape_cast %641 : vector<2x8xi32> to vector<2x8x1xi32>
      %c0_286 = arith.constant 0 : index
      %c0_287 = arith.constant 0 : index
      %643 = vector.load %arg4[%c0_286, %c0_287] : memref<8x6xf32, #tpu.memory_space<vmem>>, vector<8x6xf32>
      %c0_i32_288 = arith.constant 0 : i32
      %644 = vector.broadcast %c0_i32_288 : i32 to vector<2x8x1xi32>
      %645 = arith.cmpi eq, %642, %644 : vector<2x8x1xi32>
      %646 = arith.extui %645 : vector<2x8x1xi1> to vector<2x8x1xi32>
      %647 = arith.sitofp %646 : vector<2x8x1xi32> to vector<2x8x1xf32>
      %648 = vector.extract_strided_slice %643 {offsets = [0, 0], sizes = [1, 6], strides = [1, 1]} : vector<8x6xf32> to vector<1x6xf32>
      %649 = vector.shape_cast %648 : vector<1x6xf32> to vector<1x1x6xf32>
      %650 = vector.broadcast %647 : vector<2x8x1xf32> to vector<2x8x6xf32>
      %651 = vector.broadcast %649 : vector<1x1x6xf32> to vector<2x8x6xf32>
      %652 = arith.mulf %650, %651 : vector<2x8x6xf32>
      %c1_i32 = arith.constant 1 : i32
      %653 = vector.broadcast %c1_i32 : i32 to vector<2x8x1xi32>
      %654 = arith.cmpi eq, %642, %653 : vector<2x8x1xi32>
      %655 = arith.extui %654 : vector<2x8x1xi1> to vector<2x8x1xi32>
      %656 = arith.sitofp %655 : vector<2x8x1xi32> to vector<2x8x1xf32>
      %657 = vector.extract_strided_slice %643 {offsets = [1, 0], sizes = [1, 6], strides = [1, 1]} : vector<8x6xf32> to vector<1x6xf32>
      %658 = vector.shape_cast %657 : vector<1x6xf32> to vector<1x1x6xf32>
      %659 = vector.broadcast %656 : vector<2x8x1xf32> to vector<2x8x6xf32>
      %660 = vector.broadcast %658 : vector<1x1x6xf32> to vector<2x8x6xf32>
      %661 = arith.mulf %659, %660 : vector<2x8x6xf32>
      %662 = arith.addf %652, %661 : vector<2x8x6xf32>
      %c2_i32 = arith.constant 2 : i32
      %663 = vector.broadcast %c2_i32 : i32 to vector<2x8x1xi32>
      %664 = arith.cmpi eq, %642, %663 : vector<2x8x1xi32>
      %665 = arith.extui %664 : vector<2x8x1xi1> to vector<2x8x1xi32>
      %666 = arith.sitofp %665 : vector<2x8x1xi32> to vector<2x8x1xf32>
      %667 = vector.extract_strided_slice %643 {offsets = [2, 0], sizes = [1, 6], strides = [1, 1]} : vector<8x6xf32> to vector<1x6xf32>
      %668 = vector.shape_cast %667 : vector<1x6xf32> to vector<1x1x6xf32>
      %669 = vector.broadcast %666 : vector<2x8x1xf32> to vector<2x8x6xf32>
      %670 = vector.broadcast %668 : vector<1x1x6xf32> to vector<2x8x6xf32>
      %671 = arith.mulf %669, %670 : vector<2x8x6xf32>
      %672 = arith.addf %662, %671 : vector<2x8x6xf32>
      %c3_i32 = arith.constant 3 : i32
      %673 = vector.broadcast %c3_i32 : i32 to vector<2x8x1xi32>
      %674 = arith.cmpi eq, %642, %673 : vector<2x8x1xi32>
      %675 = arith.extui %674 : vector<2x8x1xi1> to vector<2x8x1xi32>
      %676 = arith.sitofp %675 : vector<2x8x1xi32> to vector<2x8x1xf32>
      %677 = vector.extract_strided_slice %643 {offsets = [3, 0], sizes = [1, 6], strides = [1, 1]} : vector<8x6xf32> to vector<1x6xf32>
      %678 = vector.shape_cast %677 : vector<1x6xf32> to vector<1x1x6xf32>
      %679 = vector.broadcast %676 : vector<2x8x1xf32> to vector<2x8x6xf32>
      %680 = vector.broadcast %678 : vector<1x1x6xf32> to vector<2x8x6xf32>
      %681 = arith.mulf %679, %680 : vector<2x8x6xf32>
      %682 = arith.addf %672, %681 : vector<2x8x6xf32>
      %c4_i32 = arith.constant 4 : i32
      %683 = vector.broadcast %c4_i32 : i32 to vector<2x8x1xi32>
      %684 = arith.cmpi eq, %642, %683 : vector<2x8x1xi32>
      %685 = arith.extui %684 : vector<2x8x1xi1> to vector<2x8x1xi32>
      %686 = arith.sitofp %685 : vector<2x8x1xi32> to vector<2x8x1xf32>
      %687 = vector.extract_strided_slice %643 {offsets = [4, 0], sizes = [1, 6], strides = [1, 1]} : vector<8x6xf32> to vector<1x6xf32>
      %688 = vector.shape_cast %687 : vector<1x6xf32> to vector<1x1x6xf32>
      %689 = vector.broadcast %686 : vector<2x8x1xf32> to vector<2x8x6xf32>
      %690 = vector.broadcast %688 : vector<1x1x6xf32> to vector<2x8x6xf32>
      %691 = arith.mulf %689, %690 : vector<2x8x6xf32>
      %692 = arith.addf %682, %691 : vector<2x8x6xf32>
      %c5_i32 = arith.constant 5 : i32
      %693 = vector.broadcast %c5_i32 : i32 to vector<2x8x1xi32>
      %694 = arith.cmpi eq, %642, %693 : vector<2x8x1xi32>
      %695 = arith.extui %694 : vector<2x8x1xi1> to vector<2x8x1xi32>
      %696 = arith.sitofp %695 : vector<2x8x1xi32> to vector<2x8x1xf32>
      %697 = vector.extract_strided_slice %643 {offsets = [5, 0], sizes = [1, 6], strides = [1, 1]} : vector<8x6xf32> to vector<1x6xf32>
      %698 = vector.shape_cast %697 : vector<1x6xf32> to vector<1x1x6xf32>
      %699 = vector.broadcast %696 : vector<2x8x1xf32> to vector<2x8x6xf32>
      %700 = vector.broadcast %698 : vector<1x1x6xf32> to vector<2x8x6xf32>
      %701 = arith.mulf %699, %700 : vector<2x8x6xf32>
      %702 = arith.addf %692, %701 : vector<2x8x6xf32>
      %c6_i32 = arith.constant 6 : i32
      %703 = vector.broadcast %c6_i32 : i32 to vector<2x8x1xi32>
      %704 = arith.cmpi eq, %642, %703 : vector<2x8x1xi32>
      %705 = arith.extui %704 : vector<2x8x1xi1> to vector<2x8x1xi32>
      %706 = arith.sitofp %705 : vector<2x8x1xi32> to vector<2x8x1xf32>
      %707 = vector.extract_strided_slice %643 {offsets = [6, 0], sizes = [1, 6], strides = [1, 1]} : vector<8x6xf32> to vector<1x6xf32>
      %708 = vector.shape_cast %707 : vector<1x6xf32> to vector<1x1x6xf32>
      %709 = vector.broadcast %706 : vector<2x8x1xf32> to vector<2x8x6xf32>
      %710 = vector.broadcast %708 : vector<1x1x6xf32> to vector<2x8x6xf32>
      %711 = arith.mulf %709, %710 : vector<2x8x6xf32>
      %712 = arith.addf %702, %711 : vector<2x8x6xf32>
      %c7_i32 = arith.constant 7 : i32
      %713 = vector.broadcast %c7_i32 : i32 to vector<2x8x1xi32>
      %714 = arith.cmpi eq, %642, %713 : vector<2x8x1xi32>
      %715 = arith.extui %714 : vector<2x8x1xi1> to vector<2x8x1xi32>
      %716 = arith.sitofp %715 : vector<2x8x1xi32> to vector<2x8x1xf32>
      %717 = vector.extract_strided_slice %643 {offsets = [7, 0], sizes = [1, 6], strides = [1, 1]} : vector<8x6xf32> to vector<1x6xf32>
      %718 = vector.shape_cast %717 : vector<1x6xf32> to vector<1x1x6xf32>
      %719 = vector.broadcast %716 : vector<2x8x1xf32> to vector<2x8x6xf32>
      %720 = vector.broadcast %718 : vector<1x1x6xf32> to vector<2x8x6xf32>
      %721 = arith.mulf %719, %720 : vector<2x8x6xf32>
      %722 = arith.addf %712, %721 : vector<2x8x6xf32>
      %723 = vector.broadcast %616 : vector<2x8x1xf32> to vector<2x8x6xf32>
      %724 = arith.mulf %723, %722 : vector<2x8x6xf32>
      %cst_289 = arith.constant dense<0.000000e+00> : vector<2x6xf32>
      %725 = vector.multi_reduction <add>, %724, %cst_289 [1] : vector<2x8x6xf32> to vector<2x6xf32>
      %726 = vector.shape_cast %725 : vector<2x6xf32> to vector<2x1x6xf32>
      %c0_290 = arith.constant 0 : index
      %c0_291 = arith.constant 0 : index
      %c0_292 = arith.constant 0 : index
      %727 = vector.load %arg5[%c0_290, %c0_291, %c0_292] : memref<2x1x6xf32, #tpu.memory_space<vmem>>, vector<2x1x6xf32>
      tpu.vector_store %arg5[%c0_290, %c0_291, %c0_292], %726 {strides = array<i32>} : memref<2x1x6xf32, #tpu.memory_space<vmem>>, vector<2x1x6xf32>,
    } else {
    }
    return
  }
  func.func @transform_0(%arg0: i32, %arg1: i32) -> (i32, i32, i32, i32) {
    %c0_i32 = arith.constant 0 : i32
    %c0_i32_0 = arith.constant 0 : i32
    %c0_i32_1 = arith.constant 0 : i32
    return %arg0, %c0_i32, %arg1, %c0_i32_0 : i32, i32, i32, i32
  }
  func.func @transform_1(%arg0: i32, %arg1: i32) -> (i32, i32) {
    %c0_i32 = arith.constant 0 : i32
    %c0_i32_0 = arith.constant 0 : i32
    %c0_i32_1 = arith.constant 0 : i32
    return %c0_i32, %c0_i32_0 : i32, i32
  }
  func.func @transform_2(%arg0: i32, %arg1: i32) -> (i32, i32) {
    %c0_i32 = arith.constant 0 : i32
    %c0_i32_0 = arith.constant 0 : i32
    %c0_i32_1 = arith.constant 0 : i32
    return %c0_i32, %c0_i32_0 : i32, i32
  }
  func.func @transform_3(%arg0: i32, %arg1: i32) -> (i32, i32, i32) {
    %c0_i32 = arith.constant 0 : i32
    %c0_i32_0 = arith.constant 0 : i32
    %c0_i32_1 = arith.constant 0 : i32
    return %arg0, %c0_i32, %c0_i32_0 : i32, i32, i32
  }
}

</mosaic_0001>

<llo_original>
// kernel: tpu_custom_call.1
$region0: #{tpu_custom_call.1}
  #allocation0 [shape = 'u32[]', space=smem, size = 0x4, offset = 0x4, fixed_abs, tag = 'smem constant byte address 0x4 - core index']
  #allocation1 [shape = 'u32[72,128]{1,0:T(1,128)}', space=vmem, size = 0x9000, scoped, tag = 'internal scratch']
  #allocation2 [shape = 'f32[2,8,1]{2,1,0:T(8,128)}', space=vmem, size = 0x2000, scoped, tag = 'scratch operand']
  %s0 = inlined_call_operand.hbm [shape: f32[2,4,8,256], index: 0, kind: input, shape index: {}]
  %s1 = inlined_call_operand.hbm [shape: f32[8,16], index: 1, kind: input, shape index: {}]
  %s2 = inlined_call_operand.hbm [shape: f32[8,6], index: 2, kind: input, shape index: {}]
  %s3 = inlined_call_operand.hbm [shape: f32[2,1,6], index: 3, kind: output, shape index: {}]
  %s4 = sld [smem:[#allocation0]]
  $region38: #{tpu_custom_call.1} parent=0
    _
  %s6 = ssub.s32 1, %s4
  %s7 = scalar_select 0, %s6, %s4
  $region1: #{tpu_custom_call.1} parent=0
    #allocation3 [shape = 'u8[65536]{0}', space=vmem, size = 0x10000, scoped, tag = 'input window, operand 0, single buffered']
    #allocation4 [shape = 's32[1]{0}', space=sflag, size = 0x4, scoped, tag = 'scoped memory for tpu_custom_call.1']
    #allocation5 [shape = 's32[1]{0}', space=sflag, size = 0x4, scoped, tag = 'scoped memory for tpu_custom_call.1']
    #allocation6 [shape = 's32[1]{0}', space=sflag, size = 0x4, scoped, tag = 'scoped memory for tpu_custom_call.1']
    #allocation7 [shape = 'u8[4096]{0}', space=smem, size = 0x1000, scoped, tag = 'input window, operand 1, single buffered']
    #allocation8 [shape = 'u8[4096]{0}', space=vmem, size = 0x1000, scoped, tag = 'input window, operand 2, single buffered']
    #allocation9 [shape = 's32[1]{0}', space=sflag, size = 0x4, scoped, tag = 'scoped memory for tpu_custom_call.1']
    #allocation10 [shape = 'u8[1024]{0}', space=vmem, size = 0x400, scoped, tag = 'output window, operand 0, single buffered']
    %8 = vsyncpa [#allocation4], 0
    %9 = vsyncpa [#allocation6], 0
    %10 = vsyncpa [#allocation9], 0
    %11 = vsyncpa [#allocation5], 0
    // Predicated region
    $region2: #{tpu_custom_call.1} parent=1 // pred_check
      _
    $region3: #{tpu_custom_call.1} parent=1 // pred_check_branch
      %13 = sbr.rel (0) target = $region5
    $region4: #{tpu_custom_call.1} parent=1 // pred_region
      %15 = vsyncadd [#allocation4], 0
      %s16 = sshll.u32 %s0, 4
      %s17 = int_to_ptr.hbm [resolvable:$true] %s16
      %s18 = sshll.u32 [#allocation3], 4
      %s19 = int_to_ptr.vmem [resolvable:$true] %s18
      %24 = dma.hbm_to_vmem [thread:$0]  %s17, 2048, %s19, [#allocation4], 256, 256, 16
    $region5: #{tpu_custom_call.1} parent=1 // pred_fallthru
      _
    // Predicated region
    $region6: #{tpu_custom_call.1} parent=1 // pred_check
      _
    $region7: #{tpu_custom_call.1} parent=1 // pred_check_branch
      %26 = sbr.rel (0) target = $region9
    $region8: #{tpu_custom_call.1} parent=1 // pred_region
      %28 = vsyncadd [#allocation6], 0
      %s30 = sshll.u32 %s1, 4
      %s31 = int_to_ptr.hbm [resolvable:$true] %s30
      %33 = dma.hbm_to_smem %s31, 128, [#allocation7], [#allocation6]
    $region9: #{tpu_custom_call.1} parent=1 // pred_fallthru
      _
    // Predicated region
    $region10: #{tpu_custom_call.1} parent=1 // pred_check
      _
    $region11: #{tpu_custom_call.1} parent=1 // pred_check_branch
      %35 = sbr.rel (0) target = $region13
    $region12: #{tpu_custom_call.1} parent=1 // pred_region
      %37 = vsyncadd [#allocation9], 0
      %s39 = sshll.u32 %s2, 4
      %s40 = int_to_ptr.hbm [resolvable:$true] %s39
      %s41 = sshll.u32 [#allocation8], 4
      %s42 = int_to_ptr.vmem [resolvable:$true] %s41
      %44 = dma.hbm_to_vmem [thread:$0]  %s40, 128, %s42, [#allocation9]
    $region13: #{tpu_custom_call.1} parent=1 // pred_fallthru
      _
    // Predicated region
    $region14: #{tpu_custom_call.1} parent=1 // pred_check
      _
    $region15: #{tpu_custom_call.1} parent=1 // pred_check_branch
      %46 = sbr.rel (0) target = $region17
    $region16: #{tpu_custom_call.1} parent=1 // pred_region
      %48 = dma.done [#allocation4], 2048
    $region17: #{tpu_custom_call.1} parent=1 // pred_fallthru
      _
    // Predicated region
    $region18: #{tpu_custom_call.1} parent=1 // pred_check
      _
    $region19: #{tpu_custom_call.1} parent=1 // pred_check_branch
      %50 = sbr.rel (0) target = $region21
    $region20: #{tpu_custom_call.1} parent=1 // pred_region
      %52 = dma.done [#allocation6], 128
    $region21: #{tpu_custom_call.1} parent=1 // pred_fallthru
      _
    // Predicated region
    $region22: #{tpu_custom_call.1} parent=1 // pred_check
      _
    $region23: #{tpu_custom_call.1} parent=1 // pred_check_branch
      %54 = sbr.rel (0) target = $region25
    $region24: #{tpu_custom_call.1} parent=1 // pred_region
      %56 = dma.done [#allocation9], 128
    $region25: #{tpu_custom_call.1} parent=1 // pred_fallthru
      _
    %57 = sfence
    %v58 = vld [vmem:[#allocation3] sm:$0xff]
    %v59 = vld [vmem:[#allocation3 + $0x8] sm:$0xff]
    %v60 = vld [vmem:[#allocation3 + $0x10] sm:$0xff]
    %v61 = vld [vmem:[#allocation3 + $0x18] sm:$0xff]
    %v62 = vld [vmem:[#allocation3 + $0x20] sm:$0xff]
    %v63 = vld [vmem:[#allocation3 + $0x28] sm:$0xff]
    %v64 = vld [vmem:[#allocation3 + $0x30] sm:$0xff]
    %v65 = vld [vmem:[#allocation3 + $0x38] sm:$0xff]
    %v66 = vld [vmem:[#allocation3 + $0x40] sm:$0xff]
    %v67 = vld [vmem:[#allocation3 + $0x48] sm:$0xff]
    %v68 = vld [vmem:[#allocation3 + $0x50] sm:$0xff]
    %v69 = vld [vmem:[#allocation3 + $0x58] sm:$0xff]
    %v70 = vld [vmem:[#allocation3 + $0x60] sm:$0xff]
    %v71 = vld [vmem:[#allocation3 + $0x68] sm:$0xff]
    %v72 = vld [vmem:[#allocation3 + $0x70] sm:$0xff]
    %v73 = vld [vmem:[#allocation3 + $0x78] sm:$0xff]
    %s74 = sld [smem:[#allocation7]]
    %v75 = vstv %s74
    %v76 = vmul.f32 %v58, %v75
    %v77 = vmul.f32 %v59, %v75
    %v78 = vmul.f32 %v66, %v75
    %v79 = vmul.f32 %v67, %v75
    %s80 = sld [smem:[#allocation7 + $0x80]]
    %v81 = vstv %s80
    %v82 = vmul.f32 %v60, %v81
    %v83 = vmul.f32 %v61, %v81
    %v84 = vmul.f32 %v68, %v81
    %v85 = vmul.f32 %v69, %v81
    %v86 = vadd.f32 %v76, %v82
    %v87 = vadd.f32 %v77, %v83
    %v88 = vadd.f32 %v78, %v84
    %v89 = vadd.f32 %v79, %v85
    %s90 = sld [smem:[#allocation7 + $0x100]]
    %v91 = vstv %s90
    %v92 = vmul.f32 %v62, %v91
    %v93 = vmul.f32 %v63, %v91
    %v94 = vmul.f32 %v70, %v91
    %v95 = vmul.f32 %v71, %v91
    %v96 = vadd.f32 %v86, %v92
    %v97 = vadd.f32 %v87, %v93
    %v98 = vadd.f32 %v88, %v94
    %v99 = vadd.f32 %v89, %v95
    %s100 = sld [smem:[#allocation7 + $0x180]]
    %v101 = vstv %s100
    %v102 = vmul.f32 %v64, %v101
    %v103 = vmul.f32 %v65, %v101
    %v104 = vmul.f32 %v72, %v101
    %v105 = vmul.f32 %v73, %v101
    %v106 = vadd.f32 %v96, %v102
    %v107 = vadd.f32 %v97, %v103
    %v108 = vadd.f32 %v98, %v104
    %v109 = vadd.f32 %v99, %v105
    %s110 = sld [smem:[#allocation7 + $0x200]]
    %v111 = vstv %s110
    %v112 = vadd.f32 %v106, %v111
    %v113 = vadd.f32 %v107, %v111
    %v114 = vadd.f32 %v108, %v111
    %v115 = vadd.f32 %v109, %v111
    %v116 = vmax.f32 %v112, 0.0
    %v117 = vmax.f32 %v113, 0.0
    %v118 = vmax.f32 %v114, 0.0
    %v119 = vmax.f32 %v115, 0.0
    %v120 = vadd.f32 %v116, %v117
    %121 = vadd.xlane.f32.xlu0 %v120
    %v122 = vpop.xlane.xlu0 %121
    %v123 = vadd.f32 %v118, %v119
    %124 = vadd.xlane.f32.xlu0 %v123
    %v125 = vpop.xlane.xlu0 %124
    %v126 = vrcp.pop 256.0
    %v127 = vmul.f32 256.0, %v126
    %v128 = vsub.f32 1.0, %v127
    %v129 = vmul.f32 %v126, %v128
    %v130 = vadd.f32 %v126, %v129
    %vm131 = vweird.f32 %v126
    %v132 = vsel %vm131, %v126, %v130
    %v133 = vmul.f32 %v122, %v132
    %v134 = vmul.f32 %v125, %v132
    %v135 = vmax.f32 %v116, %v117
    %136 = vmax.xlane.f32.xlu0 %v135
    %v137 = vpop.xlane.xlu0 %136
    %v138 = vmax.f32 %v118, %v119
    %139 = vmax.xlane.f32.xlu0 %v138
    %v140 = vpop.xlane.xlu0 %139
    %s141 = sld [smem:[#allocation7 + $0x280]]
    %v142 = vstv %s141
    %v143 = vmul.f32 %v133, %v142
    %v144 = vmul.f32 %v134, %v142
    %s145 = sld [smem:[#allocation7 + $0x300]]
    %v146 = vstv %s145
    %v147 = vmul.f32 %v137, %v146
    %v148 = vmul.f32 %v140, %v146
    %v149 = vadd.f32 %v143, %v147
    %v150 = vadd.f32 %v144, %v148
    %s151 = sld [smem:[#allocation7 + $0x1]]
    %v152 = vstv %s151
    %v153 = vmul.f32 %v58, %v152
    %v154 = vmul.f32 %v59, %v152
    %v155 = vmul.f32 %v66, %v152
    %v156 = vmul.f32 %v67, %v152
    %s157 = sld [smem:[#allocation7 + $0x81]]
    %v158 = vstv %s157
    %v159 = vmul.f32 %v60, %v158
    %v160 = vmul.f32 %v61, %v158
    %v161 = vmul.f32 %v68, %v158
    %v162 = vmul.f32 %v69, %v158
    %v163 = vadd.f32 %v153, %v159
    %v164 = vadd.f32 %v154, %v160
    %v165 = vadd.f32 %v155, %v161
    %v166 = vadd.f32 %v156, %v162
    %s167 = sld [smem:[#allocation7 + $0x101]]
    %v168 = vstv %s167
    %v169 = vmul.f32 %v62, %v168
    %v170 = vmul.f32 %v63, %v168
    %v171 = vmul.f32 %v70, %v168
    %v172 = vmul.f32 %v71, %v168
    %v173 = vadd.f32 %v163, %v169
    %v174 = vadd.f32 %v164, %v170
    %v175 = vadd.f32 %v165, %v171
    %v176 = vadd.f32 %v166, %v172
    %s177 = sld [smem:[#allocation7 + $0x181]]
    %v178 = vstv %s177
    %v179 = vmul.f32 %v64, %v178
    %v180 = vmul.f32 %v65, %v178
    %v181 = vmul.f32 %v72, %v178
    %v182 = vmul.f32 %v73, %v178
    %v183 = vadd.f32 %v173, %v179
    %v184 = vadd.f32 %v174, %v180
    %v185 = vadd.f32 %v175, %v181
    %v186 = vadd.f32 %v176, %v182
    %s187 = sld [smem:[#allocation7 + $0x201]]
    %v188 = vstv %s187
    %v189 = vadd.f32 %v183, %v188
    %v190 = vadd.f32 %v184, %v188
    %v191 = vadd.f32 %v185, %v188
    %v192 = vadd.f32 %v186, %v188
    %v193 = vmax.f32 %v189, 0.0
    %v194 = vmax.f32 %v190, 0.0
    %v195 = vmax.f32 %v191, 0.0
    %v196 = vmax.f32 %v192, 0.0
    %v197 = vadd.f32 %v193, %v194
    %198 = vadd.xlane.f32.xlu0 %v197
    %v199 = vpop.xlane.xlu0 %198
    %v200 = vadd.f32 %v195, %v196
    %201 = vadd.xlane.f32.xlu0 %v200
    %v202 = vpop.xlane.xlu0 %201
    %v203 = vmul.f32 %v199, %v132
    %v204 = vmul.f32 %v202, %v132
    %v205 = vmax.f32 %v193, %v194
    %206 = vmax.xlane.f32.xlu0 %v205
    %v207 = vpop.xlane.xlu0 %206
    %v208 = vmax.f32 %v195, %v196
    %209 = vmax.xlane.f32.xlu0 %v208
    %v210 = vpop.xlane.xlu0 %209
    %s211 = sld [smem:[#allocation7 + $0x281]]
    %v212 = vstv %s211
    %v213 = vmul.f32 %v203, %v212
    %v214 = vmul.f32 %v204, %v212
    %s215 = sld [smem:[#allocation7 + $0x301]]
    %v216 = vstv %s215
    %v217 = vmul.f32 %v207, %v216
    %v218 = vmul.f32 %v210, %v216
    %v219 = vadd.f32 %v213, %v217
    %v220 = vadd.f32 %v214, %v218
    %v221 = vadd.f32 %v149, %v219
    %v222 = vadd.f32 %v150, %v220
    %s223 = sld [smem:[#allocation7 + $0x2]]
    %v224 = vstv %s223
    %v225 = vmul.f32 %v58, %v224
    %v226 = vmul.f32 %v59, %v224
    %v227 = vmul.f32 %v66, %v224
    %v228 = vmul.f32 %v67, %v224
    %s229 = sld [smem:[#allocation7 + $0x82]]
    %v230 = vstv %s229
    %v231 = vmul.f32 %v60, %v230
    %v232 = vmul.f32 %v61, %v230
    %v233 = vmul.f32 %v68, %v230
    %v234 = vmul.f32 %v69, %v230
    %v235 = vadd.f32 %v225, %v231
    %v236 = vadd.f32 %v226, %v232
    %v237 = vadd.f32 %v227, %v233
    %v238 = vadd.f32 %v228, %v234
    %s239 = sld [smem:[#allocation7 + $0x102]]
    %v240 = vstv %s239
    %v241 = vmul.f32 %v62, %v240
    %v242 = vmul.f32 %v63, %v240
    %v243 = vmul.f32 %v70, %v240
    %v244 = vmul.f32 %v71, %v240
    %v245 = vadd.f32 %v235, %v241
    %v246 = vadd.f32 %v236, %v242
    %v247 = vadd.f32 %v237, %v243
    %v248 = vadd.f32 %v238, %v244
    %s249 = sld [smem:[#allocation7 + $0x182]]
    %v250 = vstv %s249
    %v251 = vmul.f32 %v64, %v250
    %v252 = vmul.f32 %v65, %v250
    %v253 = vmul.f32 %v72, %v250
    %v254 = vmul.f32 %v73, %v250
    %v255 = vadd.f32 %v245, %v251
    %v256 = vadd.f32 %v246, %v252
    %v257 = vadd.f32 %v247, %v253
    %v258 = vadd.f32 %v248, %v254
    %s259 = sld [smem:[#allocation7 + $0x202]]
    %v260 = vstv %s259
    %v261 = vadd.f32 %v255, %v260
    %v262 = vadd.f32 %v256, %v260
    %v263 = vadd.f32 %v257, %v260
    %v264 = vadd.f32 %v258, %v260
    %v265 = vmax.f32 %v261, 0.0
    %v266 = vmax.f32 %v262, 0.0
    %v267 = vmax.f32 %v263, 0.0
    %v268 = vmax.f32 %v264, 0.0
    %v269 = vadd.f32 %v265, %v266
    %270 = vadd.xlane.f32.xlu0 %v269
    %v271 = vpop.xlane.xlu0 %270
    %v272 = vadd.f32 %v267, %v268
    %273 = vadd.xlane.f32.xlu0 %v272
    %v274 = vpop.xlane.xlu0 %273
    %v275 = vmul.f32 %v271, %v132
    %v276 = vmul.f32 %v274, %v132
    %v277 = vmax.f32 %v265, %v266
    %278 = vmax.xlane.f32.xlu0 %v277
    %v279 = vpop.xlane.xlu0 %278
    %v280 = vmax.f32 %v267, %v268
    %281 = vmax.xlane.f32.xlu0 %v280
    %v282 = vpop.xlane.xlu0 %281
    %s283 = sld [smem:[#allocation7 + $0x282]]
    %v284 = vstv %s283
    %v285 = vmul.f32 %v275, %v284
    %v286 = vmul.f32 %v276, %v284
    %s287 = sld [smem:[#allocation7 + $0x302]]
    %v288 = vstv %s287
    %v289 = vmul.f32 %v279, %v288
    %v290 = vmul.f32 %v282, %v288
    %v291 = vadd.f32 %v285, %v289
    %v292 = vadd.f32 %v286, %v290
    %v293 = vadd.f32 %v221, %v291
    %v294 = vadd.f32 %v222, %v292
    %s295 = sld [smem:[#allocation7 + $0x3]]
    %v296 = vstv %s295
    %v297 = vmul.f32 %v58, %v296
    %v298 = vmul.f32 %v59, %v296
    %v299 = vmul.f32 %v66, %v296
    %v300 = vmul.f32 %v67, %v296
    %s301 = sld [smem:[#allocation7 + $0x83]]
    %v302 = vstv %s301
    %v303 = vmul.f32 %v60, %v302
    %v304 = vmul.f32 %v61, %v302
    %v305 = vmul.f32 %v68, %v302
    %v306 = vmul.f32 %v69, %v302
    %v307 = vadd.f32 %v297, %v303
    %v308 = vadd.f32 %v298, %v304
    %v309 = vadd.f32 %v299, %v305
    %v310 = vadd.f32 %v300, %v306
    %s311 = sld [smem:[#allocation7 + $0x103]]
    %v312 = vstv %s311
    %v313 = vmul.f32 %v62, %v312
    %v314 = vmul.f32 %v63, %v312
    %v315 = vmul.f32 %v70, %v312
    %v316 = vmul.f32 %v71, %v312
    %v317 = vadd.f32 %v307, %v313
    %v318 = vadd.f32 %v308, %v314
    %v319 = vadd.f32 %v309, %v315
    %v320 = vadd.f32 %v310, %v316
    %s321 = sld [smem:[#allocation7 + $0x183]]
    %v322 = vstv %s321
    %v323 = vmul.f32 %v64, %v322
    %v324 = vmul.f32 %v65, %v322
    %v325 = vmul.f32 %v72, %v322
    %v326 = vmul.f32 %v73, %v322
    %v327 = vadd.f32 %v317, %v323
    %v328 = vadd.f32 %v318, %v324
    %v329 = vadd.f32 %v319, %v325
    %v330 = vadd.f32 %v320, %v326
    %s331 = sld [smem:[#allocation7 + $0x203]]
    %v332 = vstv %s331
    %v333 = vadd.f32 %v327, %v332
    %v334 = vadd.f32 %v328, %v332
    %v335 = vadd.f32 %v329, %v332
    %v336 = vadd.f32 %v330, %v332
    %v337 = vmax.f32 %v333, 0.0
    %v338 = vmax.f32 %v334, 0.0
    %v339 = vmax.f32 %v335, 0.0
    %v340 = vmax.f32 %v336, 0.0
    %v341 = vadd.f32 %v337, %v338
    %342 = vadd.xlane.f32.xlu0 %v341
    %v343 = vpop.xlane.xlu0 %342
    %v344 = vadd.f32 %v339, %v340
    %345 = vadd.xlane.f32.xlu0 %v344
    %v346 = vpop.xlane.xlu0 %345
    %v347 = vmul.f32 %v343, %v132
    %v348 = vmul.f32 %v346, %v132
    %v349 = vmax.f32 %v337, %v338
    %350 = vmax.xlane.f32.xlu0 %v349
    %v351 = vpop.xlane.xlu0 %350
    %v352 = vmax.f32 %v339, %v340
    %353 = vmax.xlane.f32.xlu0 %v352
    %v354 = vpop.xlane.xlu0 %353
    %s355 = sld [smem:[#allocation7 + $0x283]]
    %v356 = vstv %s355
    %v357 = vmul.f32 %v347, %v356
    %v358 = vmul.f32 %v348, %v356
    %s359 = sld [smem:[#allocation7 + $0x303]]
    %v360 = vstv %s359
    %v361 = vmul.f32 %v351, %v360
    %v362 = vmul.f32 %v354, %v360
    %v363 = vadd.f32 %v357, %v361
    %v364 = vadd.f32 %v358, %v362
    %v365 = vadd.f32 %v293, %v363
    %v366 = vadd.f32 %v294, %v364
    %s367 = sld [smem:[#allocation7 + $0x4]]
    %v368 = vstv %s367
    %v369 = vmul.f32 %v58, %v368
    %v370 = vmul.f32 %v59, %v368
    %v371 = vmul.f32 %v66, %v368
    %v372 = vmul.f32 %v67, %v368
    %s373 = sld [smem:[#allocation7 + $0x84]]
    %v374 = vstv %s373
    %v375 = vmul.f32 %v60, %v374
    %v376 = vmul.f32 %v61, %v374
    %v377 = vmul.f32 %v68, %v374
    %v378 = vmul.f32 %v69, %v374
    %v379 = vadd.f32 %v369, %v375
    %v380 = vadd.f32 %v370, %v376
    %v381 = vadd.f32 %v371, %v377
    %v382 = vadd.f32 %v372, %v378
    %s383 = sld [smem:[#allocation7 + $0x104]]
    %v384 = vstv %s383
    %v385 = vmul.f32 %v62, %v384
    %v386 = vmul.f32 %v63, %v384
    %v387 = vmul.f32 %v70, %v384
    %v388 = vmul.f32 %v71, %v384
    %v389 = vadd.f32 %v379, %v385
    %v390 = vadd.f32 %v380, %v386
    %v391 = vadd.f32 %v381, %v387
    %v392 = vadd.f32 %v382, %v388
    %s393 = sld [smem:[#allocation7 + $0x184]]
    %v394 = vstv %s393
    %v395 = vmul.f32 %v64, %v394
    %v396 = vmul.f32 %v65, %v394
    %v397 = vmul.f32 %v72, %v394
    %v398 = vmul.f32 %v73, %v394
    %v399 = vadd.f32 %v389, %v395
    %v400 = vadd.f32 %v390, %v396
    %v401 = vadd.f32 %v391, %v397
    %v402 = vadd.f32 %v392, %v398
    %s403 = sld [smem:[#allocation7 + $0x204]]
    %v404 = vstv %s403
    %v405 = vadd.f32 %v399, %v404
    %v406 = vadd.f32 %v400, %v404
    %v407 = vadd.f32 %v401, %v404
    %v408 = vadd.f32 %v402, %v404
    %v409 = vmax.f32 %v405, 0.0
    %v410 = vmax.f32 %v406, 0.0
    %v411 = vmax.f32 %v407, 0.0
    %v412 = vmax.f32 %v408, 0.0
    %v413 = vadd.f32 %v409, %v410
    %414 = vadd.xlane.f32.xlu0 %v413
    %v415 = vpop.xlane.xlu0 %414
    %v416 = vadd.f32 %v411, %v412
    %417 = vadd.xlane.f32.xlu0 %v416
    %v418 = vpop.xlane.xlu0 %417
    %v419 = vmul.f32 %v415, %v132
    %v420 = vmul.f32 %v418, %v132
    %v421 = vmax.f32 %v409, %v410
    %422 = vmax.xlane.f32.xlu0 %v421
    %v423 = vpop.xlane.xlu0 %422
    %v424 = vmax.f32 %v411, %v412
    %425 = vmax.xlane.f32.xlu0 %v424
    %v426 = vpop.xlane.xlu0 %425
    %s427 = sld [smem:[#allocation7 + $0x284]]
    %v428 = vstv %s427
    %v429 = vmul.f32 %v419, %v428
    %v430 = vmul.f32 %v420, %v428
    %s431 = sld [smem:[#allocation7 + $0x304]]
    %v432 = vstv %s431
    %v433 = vmul.f32 %v423, %v432
    %v434 = vmul.f32 %v426, %v432
    %v435 = vadd.f32 %v429, %v433
    %v436 = vadd.f32 %v430, %v434
    %v437 = vadd.f32 %v365, %v435
    %v438 = vadd.f32 %v366, %v436
    %s439 = sld [smem:[#allocation7 + $0x5]]
    %v440 = vstv %s439
    %v441 = vmul.f32 %v58, %v440
    %v442 = vmul.f32 %v59, %v440
    %v443 = vmul.f32 %v66, %v440
    %v444 = vmul.f32 %v67, %v440
    %s445 = sld [smem:[#allocation7 + $0x85]]
    %v446 = vstv %s445
    %v447 = vmul.f32 %v60, %v446
    %v448 = vmul.f32 %v61, %v446
    %v449 = vmul.f32 %v68, %v446
    %v450 = vmul.f32 %v69, %v446
    %v451 = vadd.f32 %v441, %v447
    %v452 = vadd.f32 %v442, %v448
    %v453 = vadd.f32 %v443, %v449
    %v454 = vadd.f32 %v444, %v450
    %s455 = sld [smem:[#allocation7 + $0x105]]
    %v456 = vstv %s455
    %v457 = vmul.f32 %v62, %v456
    %v458 = vmul.f32 %v63, %v456
    %v459 = vmul.f32 %v70, %v456
    %v460 = vmul.f32 %v71, %v456
    %v461 = vadd.f32 %v451, %v457
    %v462 = vadd.f32 %v452, %v458
    %v463 = vadd.f32 %v453, %v459
    %v464 = vadd.f32 %v454, %v460
    %s465 = sld [smem:[#allocation7 + $0x185]]
    %v466 = vstv %s465
    %v467 = vmul.f32 %v64, %v466
    %v468 = vmul.f32 %v65, %v466
    %v469 = vmul.f32 %v72, %v466
    %v470 = vmul.f32 %v73, %v466
    %v471 = vadd.f32 %v461, %v467
    %v472 = vadd.f32 %v462, %v468
    %v473 = vadd.f32 %v463, %v469
    %v474 = vadd.f32 %v464, %v470
    %s475 = sld [smem:[#allocation7 + $0x205]]
    %v476 = vstv %s475
    %v477 = vadd.f32 %v471, %v476
    %v478 = vadd.f32 %v472, %v476
    %v479 = vadd.f32 %v473, %v476
    %v480 = vadd.f32 %v474, %v476
    %v481 = vmax.f32 %v477, 0.0
    %v482 = vmax.f32 %v478, 0.0
    %v483 = vmax.f32 %v479, 0.0
    %v484 = vmax.f32 %v480, 0.0
    %v485 = vadd.f32 %v481, %v482
    %486 = vadd.xlane.f32.xlu0 %v485
    %v487 = vpop.xlane.xlu0 %486
    %v488 = vadd.f32 %v483, %v484
    %489 = vadd.xlane.f32.xlu0 %v488
    %v490 = vpop.xlane.xlu0 %489
    %v491 = vmul.f32 %v487, %v132
    %v492 = vmul.f32 %v490, %v132
    %v493 = vmax.f32 %v481, %v482
    %494 = vmax.xlane.f32.xlu0 %v493
    %v495 = vpop.xlane.xlu0 %494
    %v496 = vmax.f32 %v483, %v484
    %497 = vmax.xlane.f32.xlu0 %v496
    %v498 = vpop.xlane.xlu0 %497
    %s499 = sld [smem:[#allocation7 + $0x285]]
    %v500 = vstv %s499
    %v501 = vmul.f32 %v491, %v500
    %v502 = vmul.f32 %v492, %v500
    %s503 = sld [smem:[#allocation7 + $0x305]]
    %v504 = vstv %s503
    %v505 = vmul.f32 %v495, %v504
    %v506 = vmul.f32 %v498, %v504
    %v507 = vadd.f32 %v501, %v505
    %v508 = vadd.f32 %v502, %v506
    %v509 = vadd.f32 %v437, %v507
    %v510 = vadd.f32 %v438, %v508
    %s511 = sld [smem:[#allocation7 + $0x6]]
    %v512 = vstv %s511
    %v513 = vmul.f32 %v58, %v512
    %v514 = vmul.f32 %v59, %v512
    %v515 = vmul.f32 %v66, %v512
    %v516 = vmul.f32 %v67, %v512
    %s517 = sld [smem:[#allocation7 + $0x86]]
    %v518 = vstv %s517
    %v519 = vmul.f32 %v60, %v518
    %v520 = vmul.f32 %v61, %v518
    %v521 = vmul.f32 %v68, %v518
    %v522 = vmul.f32 %v69, %v518
    %v523 = vadd.f32 %v513, %v519
    %v524 = vadd.f32 %v514, %v520
    %v525 = vadd.f32 %v515, %v521
    %v526 = vadd.f32 %v516, %v522
    %s527 = sld [smem:[#allocation7 + $0x106]]
    %v528 = vstv %s527
    %v529 = vmul.f32 %v62, %v528
    %v530 = vmul.f32 %v63, %v528
    %v531 = vmul.f32 %v70, %v528
    %v532 = vmul.f32 %v71, %v528
    %v533 = vadd.f32 %v523, %v529
    %v534 = vadd.f32 %v524, %v530
    %v535 = vadd.f32 %v525, %v531
    %v536 = vadd.f32 %v526, %v532
    %s537 = sld [smem:[#allocation7 + $0x186]]
    %v538 = vstv %s537
    %v539 = vmul.f32 %v64, %v538
    %v540 = vmul.f32 %v65, %v538
    %v541 = vmul.f32 %v72, %v538
    %v542 = vmul.f32 %v73, %v538
    %v543 = vadd.f32 %v533, %v539
    %v544 = vadd.f32 %v534, %v540
    %v545 = vadd.f32 %v535, %v541
    %v546 = vadd.f32 %v536, %v542
    %s547 = sld [smem:[#allocation7 + $0x206]]
    %v548 = vstv %s547
    %v549 = vadd.f32 %v543, %v548
    %v550 = vadd.f32 %v544, %v548
    %v551 = vadd.f32 %v545, %v548
    %v552 = vadd.f32 %v546, %v548
    %v553 = vmax.f32 %v549, 0.0
    %v554 = vmax.f32 %v550, 0.0
    %v555 = vmax.f32 %v551, 0.0
    %v556 = vmax.f32 %v552, 0.0
    %v557 = vadd.f32 %v553, %v554
    %558 = vadd.xlane.f32.xlu0 %v557
    %v559 = vpop.xlane.xlu0 %558
    %v560 = vadd.f32 %v555, %v556
    %561 = vadd.xlane.f32.xlu0 %v560
    %v562 = vpop.xlane.xlu0 %561
    %v563 = vmul.f32 %v559, %v132
    %v564 = vmul.f32 %v562, %v132
    %v565 = vmax.f32 %v553, %v554
    %566 = vmax.xlane.f32.xlu0 %v565
    %v567 = vpop.xlane.xlu0 %566
    %v568 = vmax.f32 %v555, %v556
    %569 = vmax.xlane.f32.xlu0 %v568
    %v570 = vpop.xlane.xlu0 %569
    %s571 = sld [smem:[#allocation7 + $0x286]]
    %v572 = vstv %s571
    %v573 = vmul.f32 %v563, %v572
    %v574 = vmul.f32 %v564, %v572
    %s575 = sld [smem:[#allocation7 + $0x306]]
    %v576 = vstv %s575
    %v577 = vmul.f32 %v567, %v576
    %v578 = vmul.f32 %v570, %v576
    %v579 = vadd.f32 %v573, %v577
    %v580 = vadd.f32 %v574, %v578
    %v581 = vadd.f32 %v509, %v579
    %v582 = vadd.f32 %v510, %v580
    %s583 = sld [smem:[#allocation7 + $0x7]]
    %v584 = vstv %s583
    %v585 = vmul.f32 %v58, %v584
    %v586 = vmul.f32 %v59, %v584
    %v587 = vmul.f32 %v66, %v584
    %v588 = vmul.f32 %v67, %v584
    %s589 = sld [smem:[#allocation7 + $0x87]]
    %v590 = vstv %s589
    %v591 = vmul.f32 %v60, %v590
    %v592 = vmul.f32 %v61, %v590
    %v593 = vmul.f32 %v68, %v590
    %v594 = vmul.f32 %v69, %v590
    %v595 = vadd.f32 %v585, %v591
    %v596 = vadd.f32 %v586, %v592
    %v597 = vadd.f32 %v587, %v593
    %v598 = vadd.f32 %v588, %v594
    %s599 = sld [smem:[#allocation7 + $0x107]]
    %v600 = vstv %s599
    %v601 = vmul.f32 %v62, %v600
    %v602 = vmul.f32 %v63, %v600
    %v603 = vmul.f32 %v70, %v600
    %v604 = vmul.f32 %v71, %v600
    %v605 = vadd.f32 %v595, %v601
    %v606 = vadd.f32 %v596, %v602
    %v607 = vadd.f32 %v597, %v603
    %v608 = vadd.f32 %v598, %v604
    %s609 = sld [smem:[#allocation7 + $0x187]]
    %v610 = vstv %s609
    %v611 = vmul.f32 %v64, %v610
    %v612 = vmul.f32 %v65, %v610
    %v613 = vmul.f32 %v72, %v610
    %v614 = vmul.f32 %v73, %v610
    %v615 = vadd.f32 %v605, %v611
    %v616 = vadd.f32 %v606, %v612
    %v617 = vadd.f32 %v607, %v613
    %v618 = vadd.f32 %v608, %v614
    %s619 = sld [smem:[#allocation7 + $0x207]]
    %v620 = vstv %s619
    %v621 = vadd.f32 %v615, %v620
    %v622 = vadd.f32 %v616, %v620
    %v623 = vadd.f32 %v617, %v620
    %v624 = vadd.f32 %v618, %v620
    %v625 = vmax.f32 %v621, 0.0
    %v626 = vmax.f32 %v622, 0.0
    %v627 = vmax.f32 %v623, 0.0
    %v628 = vmax.f32 %v624, 0.0
    %v629 = vadd.f32 %v625, %v626
    %630 = vadd.xlane.f32.xlu0 %v629
    %v631 = vpop.xlane.xlu0 %630
    %v632 = vadd.f32 %v627, %v628
    %633 = vadd.xlane.f32.xlu0 %v632
    %v634 = vpop.xlane.xlu0 %633
    %v635 = vmul.f32 %v631, %v132
    %v636 = vmul.f32 %v634, %v132
    %v637 = vmax.f32 %v625, %v626
    %638 = vmax.xlane.f32.xlu0 %v637
    %v639 = vpop.xlane.xlu0 %638
    %v640 = vmax.f32 %v627, %v628
    %641 = vmax.xlane.f32.xlu0 %v640
    %v642 = vpop.xlane.xlu0 %641
    %s643 = sld [smem:[#allocation7 + $0x287]]
    %v644 = vstv %s643
    %v645 = vmul.f32 %v635, %v644
    %v646 = vmul.f32 %v636, %v644
    %s647 = sld [smem:[#allocation7 + $0x307]]
    %v648 = vstv %s647
    %v649 = vmul.f32 %v639, %v648
    %v650 = vmul.f32 %v642, %v648
    %v651 = vadd.f32 %v645, %v649
    %v652 = vadd.f32 %v646, %v650
    %v653 = vadd.f32 %v581, %v651
    %v654 = vadd.f32 %v582, %v652
    %s655 = sld [smem:[#allocation7 + $0x8]]
    %v656 = vstv %s655
    %v657 = vmul.f32 %v58, %v656
    %v658 = vmul.f32 %v59, %v656
    %v659 = vmul.f32 %v66, %v656
    %v660 = vmul.f32 %v67, %v656
    %s661 = sld [smem:[#allocation7 + $0x88]]
    %v662 = vstv %s661
    %v663 = vmul.f32 %v60, %v662
    %v664 = vmul.f32 %v61, %v662
    %v665 = vmul.f32 %v68, %v662
    %v666 = vmul.f32 %v69, %v662
    %v667 = vadd.f32 %v657, %v663
    %v668 = vadd.f32 %v658, %v664
    %v669 = vadd.f32 %v659, %v665
    %v670 = vadd.f32 %v660, %v666
    %s671 = sld [smem:[#allocation7 + $0x108]]
    %v672 = vstv %s671
    %v673 = vmul.f32 %v62, %v672
    %v674 = vmul.f32 %v63, %v672
    %v675 = vmul.f32 %v70, %v672
    %v676 = vmul.f32 %v71, %v672
    %v677 = vadd.f32 %v667, %v673
    %v678 = vadd.f32 %v668, %v674
    %v679 = vadd.f32 %v669, %v675
    %v680 = vadd.f32 %v670, %v676
    %s681 = sld [smem:[#allocation7 + $0x188]]
    %v682 = vstv %s681
    %v683 = vmul.f32 %v64, %v682
    %v684 = vmul.f32 %v65, %v682
    %v685 = vmul.f32 %v72, %v682
    %v686 = vmul.f32 %v73, %v682
    %v687 = vadd.f32 %v677, %v683
    %v688 = vadd.f32 %v678, %v684
    %v689 = vadd.f32 %v679, %v685
    %v690 = vadd.f32 %v680, %v686
    %s691 = sld [smem:[#allocation7 + $0x208]]
    %v692 = vstv %s691
    %v693 = vadd.f32 %v687, %v692
    %v694 = vadd.f32 %v688, %v692
    %v695 = vadd.f32 %v689, %v692
    %v696 = vadd.f32 %v690, %v692
    %v697 = vmax.f32 %v693, 0.0
    %v698 = vmax.f32 %v694, 0.0
    %v699 = vmax.f32 %v695, 0.0
    %v700 = vmax.f32 %v696, 0.0
    %v701 = vadd.f32 %v697, %v698
    %702 = vadd.xlane.f32.xlu0 %v701
    %v703 = vpop.xlane.xlu0 %702
    %v704 = vadd.f32 %v699, %v700
    %705 = vadd.xlane.f32.xlu0 %v704
    %v706 = vpop.xlane.xlu0 %705
    %v707 = vmul.f32 %v703, %v132
    %v708 = vmul.f32 %v706, %v132
    %v709 = vmax.f32 %v697, %v698
    %710 = vmax.xlane.f32.xlu0 %v709
    %v711 = vpop.xlane.xlu0 %710
    %v712 = vmax.f32 %v699, %v700
    %713 = vmax.xlane.f32.xlu0 %v712
    %v714 = vpop.xlane.xlu0 %713
    %s715 = sld [smem:[#allocation7 + $0x288]]
    %v716 = vstv %s715
    %v717 = vmul.f32 %v707, %v716
    %v718 = vmul.f32 %v708, %v716
    %s719 = sld [smem:[#allocation7 + $0x308]]
    %v720 = vstv %s719
    %v721 = vmul.f32 %v711, %v720
    %v722 = vmul.f32 %v714, %v720
    %v723 = vadd.f32 %v717, %v721
    %v724 = vadd.f32 %v718, %v722
    %v725 = vadd.f32 %v653, %v723
    %v726 = vadd.f32 %v654, %v724
    %s727 = sld [smem:[#allocation7 + $0x9]]
    %v728 = vstv %s727
    %v729 = vmul.f32 %v58, %v728
    %v730 = vmul.f32 %v59, %v728
    %v731 = vmul.f32 %v66, %v728
    %v732 = vmul.f32 %v67, %v728
    %s733 = sld [smem:[#allocation7 + $0x89]]
    %v734 = vstv %s733
    %v735 = vmul.f32 %v60, %v734
    %v736 = vmul.f32 %v61, %v734
    %v737 = vmul.f32 %v68, %v734
    %v738 = vmul.f32 %v69, %v734
    %v739 = vadd.f32 %v729, %v735
    %v740 = vadd.f32 %v730, %v736
    %v741 = vadd.f32 %v731, %v737
    %v742 = vadd.f32 %v732, %v738
    %s743 = sld [smem:[#allocation7 + $0x109]]
    %v744 = vstv %s743
    %v745 = vmul.f32 %v62, %v744
    %v746 = vmul.f32 %v63, %v744
    %v747 = vmul.f32 %v70, %v744
    %v748 = vmul.f32 %v71, %v744
    %v749 = vadd.f32 %v739, %v745
    %v750 = vadd.f32 %v740, %v746
    %v751 = vadd.f32 %v741, %v747
    %v752 = vadd.f32 %v742, %v748
    %s753 = sld [smem:[#allocation7 + $0x189]]
    %v754 = vstv %s753
    %v755 = vmul.f32 %v64, %v754
    %v756 = vmul.f32 %v65, %v754
    %v757 = vmul.f32 %v72, %v754
    %v758 = vmul.f32 %v73, %v754
    %v759 = vadd.f32 %v749, %v755
    %v760 = vadd.f32 %v750, %v756
    %v761 = vadd.f32 %v751, %v757
    %v762 = vadd.f32 %v752, %v758
    %s763 = sld [smem:[#allocation7 + $0x209]]
    %v764 = vstv %s763
    %v765 = vadd.f32 %v759, %v764
    %v766 = vadd.f32 %v760, %v764
    %v767 = vadd.f32 %v761, %v764
    %v768 = vadd.f32 %v762, %v764
    %v769 = vmax.f32 %v765, 0.0
    %v770 = vmax.f32 %v766, 0.0
    %v771 = vmax.f32 %v767, 0.0
    %v772 = vmax.f32 %v768, 0.0
    %v773 = vadd.f32 %v769, %v770
    %774 = vadd.xlane.f32.xlu0 %v773
    %v775 = vpop.xlane.xlu0 %774
    %v776 = vadd.f32 %v771, %v772
    %777 = vadd.xlane.f32.xlu0 %v776
    %v778 = vpop.xlane.xlu0 %777
    %v779 = vmul.f32 %v775, %v132
    %v780 = vmul.f32 %v778, %v132
    %v781 = vmax.f32 %v769, %v770
    %782 = vmax.xlane.f32.xlu0 %v781
    %v783 = vpop.xlane.xlu0 %782
    %v784 = vmax.f32 %v771, %v772
    %785 = vmax.xlane.f32.xlu0 %v784
    %v786 = vpop.xlane.xlu0 %785
    %s787 = sld [smem:[#allocation7 + $0x289]]
    %v788 = vstv %s787
    %v789 = vmul.f32 %v779, %v788
    %v790 = vmul.f32 %v780, %v788
    %s791 = sld [smem:[#allocation7 + $0x309]]
    %v792 = vstv %s791
    %v793 = vmul.f32 %v783, %v792
    %v794 = vmul.f32 %v786, %v792
    %v795 = vadd.f32 %v789, %v793
    %v796 = vadd.f32 %v790, %v794
    %v797 = vadd.f32 %v725, %v795
    %v798 = vadd.f32 %v726, %v796
    %s799 = sld [smem:[#allocation7 + $0xa]]
    %v800 = vstv %s799
    %v801 = vmul.f32 %v58, %v800
    %v802 = vmul.f32 %v59, %v800
    %v803 = vmul.f32 %v66, %v800
    %v804 = vmul.f32 %v67, %v800
    %s805 = sld [smem:[#allocation7 + $0x8a]]
    %v806 = vstv %s805
    %v807 = vmul.f32 %v60, %v806
    %v808 = vmul.f32 %v61, %v806
    %v809 = vmul.f32 %v68, %v806
    %v810 = vmul.f32 %v69, %v806
    %v811 = vadd.f32 %v801, %v807
    %v812 = vadd.f32 %v802, %v808
    %v813 = vadd.f32 %v803, %v809
    %v814 = vadd.f32 %v804, %v810
    %s815 = sld [smem:[#allocation7 + $0x10a]]
    %v816 = vstv %s815
    %v817 = vmul.f32 %v62, %v816
    %v818 = vmul.f32 %v63, %v816
    %v819 = vmul.f32 %v70, %v816
    %v820 = vmul.f32 %v71, %v816
    %v821 = vadd.f32 %v811, %v817
    %v822 = vadd.f32 %v812, %v818
    %v823 = vadd.f32 %v813, %v819
    %v824 = vadd.f32 %v814, %v820
    %s825 = sld [smem:[#allocation7 + $0x18a]]
    %v826 = vstv %s825
    %v827 = vmul.f32 %v64, %v826
    %v828 = vmul.f32 %v65, %v826
    %v829 = vmul.f32 %v72, %v826
    %v830 = vmul.f32 %v73, %v826
    %v831 = vadd.f32 %v821, %v827
    %v832 = vadd.f32 %v822, %v828
    %v833 = vadd.f32 %v823, %v829
    %v834 = vadd.f32 %v824, %v830
    %s835 = sld [smem:[#allocation7 + $0x20a]]
    %v836 = vstv %s835
    %v837 = vadd.f32 %v831, %v836
    %v838 = vadd.f32 %v832, %v836
    %v839 = vadd.f32 %v833, %v836
    %v840 = vadd.f32 %v834, %v836
    %v841 = vmax.f32 %v837, 0.0
    %v842 = vmax.f32 %v838, 0.0
    %v843 = vmax.f32 %v839, 0.0
    %v844 = vmax.f32 %v840, 0.0
    %v845 = vadd.f32 %v841, %v842
    %846 = vadd.xlane.f32.xlu0 %v845
    %v847 = vpop.xlane.xlu0 %846
    %v848 = vadd.f32 %v843, %v844
    %849 = vadd.xlane.f32.xlu0 %v848
    %v850 = vpop.xlane.xlu0 %849
    %v851 = vmul.f32 %v847, %v132
    %v852 = vmul.f32 %v850, %v132
    %v853 = vmax.f32 %v841, %v842
    %854 = vmax.xlane.f32.xlu0 %v853
    %v855 = vpop.xlane.xlu0 %854
    %v856 = vmax.f32 %v843, %v844
    %857 = vmax.xlane.f32.xlu0 %v856
    %v858 = vpop.xlane.xlu0 %857
    %s859 = sld [smem:[#allocation7 + $0x28a]]
    %v860 = vstv %s859
    %v861 = vmul.f32 %v851, %v860
    %v862 = vmul.f32 %v852, %v860
    %s863 = sld [smem:[#allocation7 + $0x30a]]
    %v864 = vstv %s863
    %v865 = vmul.f32 %v855, %v864
    %v866 = vmul.f32 %v858, %v864
    %v867 = vadd.f32 %v861, %v865
    %v868 = vadd.f32 %v862, %v866
    %v869 = vadd.f32 %v797, %v867
    %v870 = vadd.f32 %v798, %v868
    %s871 = sld [smem:[#allocation7 + $0xb]]
    %v872 = vstv %s871
    %v873 = vmul.f32 %v58, %v872
    %v874 = vmul.f32 %v59, %v872
    %v875 = vmul.f32 %v66, %v872
    %v876 = vmul.f32 %v67, %v872
    %s877 = sld [smem:[#allocation7 + $0x8b]]
    %v878 = vstv %s877
    %v879 = vmul.f32 %v60, %v878
    %v880 = vmul.f32 %v61, %v878
    %v881 = vmul.f32 %v68, %v878
    %v882 = vmul.f32 %v69, %v878
    %v883 = vadd.f32 %v873, %v879
    %v884 = vadd.f32 %v874, %v880
    %v885 = vadd.f32 %v875, %v881
    %v886 = vadd.f32 %v876, %v882
    %s887 = sld [smem:[#allocation7 + $0x10b]]
    %v888 = vstv %s887
    %v889 = vmul.f32 %v62, %v888
    %v890 = vmul.f32 %v63, %v888
    %v891 = vmul.f32 %v70, %v888
    %v892 = vmul.f32 %v71, %v888
    %v893 = vadd.f32 %v883, %v889
    %v894 = vadd.f32 %v884, %v890
    %v895 = vadd.f32 %v885, %v891
    %v896 = vadd.f32 %v886, %v892
    %s897 = sld [smem:[#allocation7 + $0x18b]]
    %v898 = vstv %s897
    %v899 = vmul.f32 %v64, %v898
    %v900 = vmul.f32 %v65, %v898
    %v901 = vmul.f32 %v72, %v898
    %v902 = vmul.f32 %v73, %v898
    %v903 = vadd.f32 %v893, %v899
    %v904 = vadd.f32 %v894, %v900
    %v905 = vadd.f32 %v895, %v901
    %v906 = vadd.f32 %v896, %v902
    %s907 = sld [smem:[#allocation7 + $0x20b]]
    %v908 = vstv %s907
    %v909 = vadd.f32 %v903, %v908
    %v910 = vadd.f32 %v904, %v908
    %v911 = vadd.f32 %v905, %v908
    %v912 = vadd.f32 %v906, %v908
    %v913 = vmax.f32 %v909, 0.0
    %v914 = vmax.f32 %v910, 0.0
    %v915 = vmax.f32 %v911, 0.0
    %v916 = vmax.f32 %v912, 0.0
    %v917 = vadd.f32 %v913, %v914
    %918 = vadd.xlane.f32.xlu0 %v917
    %v919 = vpop.xlane.xlu0 %918
    %v920 = vadd.f32 %v915, %v916
    %921 = vadd.xlane.f32.xlu0 %v920
    %v922 = vpop.xlane.xlu0 %921
    %v923 = vmul.f32 %v919, %v132
    %v924 = vmul.f32 %v922, %v132
    %v925 = vmax.f32 %v913, %v914
    %926 = vmax.xlane.f32.xlu0 %v925
    %v927 = vpop.xlane.xlu0 %926
    %v928 = vmax.f32 %v915, %v916
    %929 = vmax.xlane.f32.xlu0 %v928
    %v930 = vpop.xlane.xlu0 %929
    %s931 = sld [smem:[#allocation7 + $0x28b]]
    %v932 = vstv %s931
    %v933 = vmul.f32 %v923, %v932
    %v934 = vmul.f32 %v924, %v932
    %s935 = sld [smem:[#allocation7 + $0x30b]]
    %v936 = vstv %s935
    %v937 = vmul.f32 %v927, %v936
    %v938 = vmul.f32 %v930, %v936
    %v939 = vadd.f32 %v933, %v937
    %v940 = vadd.f32 %v934, %v938
    %v941 = vadd.f32 %v869, %v939
    %v942 = vadd.f32 %v870, %v940
    %s943 = sld [smem:[#allocation7 + $0xc]]
    %v944 = vstv %s943
    %v945 = vmul.f32 %v58, %v944
    %v946 = vmul.f32 %v59, %v944
    %v947 = vmul.f32 %v66, %v944
    %v948 = vmul.f32 %v67, %v944
    %s949 = sld [smem:[#allocation7 + $0x8c]]
    %v950 = vstv %s949
    %v951 = vmul.f32 %v60, %v950
    %v952 = vmul.f32 %v61, %v950
    %v953 = vmul.f32 %v68, %v950
    %v954 = vmul.f32 %v69, %v950
    %v955 = vadd.f32 %v945, %v951
    %v956 = vadd.f32 %v946, %v952
    %v957 = vadd.f32 %v947, %v953
    %v958 = vadd.f32 %v948, %v954
    %s959 = sld [smem:[#allocation7 + $0x10c]]
    %v960 = vstv %s959
    %v961 = vmul.f32 %v62, %v960
    %v962 = vmul.f32 %v63, %v960
    %v963 = vmul.f32 %v70, %v960
    %v964 = vmul.f32 %v71, %v960
    %v965 = vadd.f32 %v955, %v961
    %v966 = vadd.f32 %v956, %v962
    %v967 = vadd.f32 %v957, %v963
    %v968 = vadd.f32 %v958, %v964
    %s969 = sld [smem:[#allocation7 + $0x18c]]
    %v970 = vstv %s969
    %v971 = vmul.f32 %v64, %v970
    %v972 = vmul.f32 %v65, %v970
    %v973 = vmul.f32 %v72, %v970
    %v974 = vmul.f32 %v73, %v970
    %v975 = vadd.f32 %v965, %v971
    %v976 = vadd.f32 %v966, %v972
    %v977 = vadd.f32 %v967, %v973
    %v978 = vadd.f32 %v968, %v974
    %s979 = sld [smem:[#allocation7 + $0x20c]]
    %v980 = vstv %s979
    %v981 = vadd.f32 %v975, %v980
    %v982 = vadd.f32 %v976, %v980
    %v983 = vadd.f32 %v977, %v980
    %v984 = vadd.f32 %v978, %v980
    %v985 = vmax.f32 %v981, 0.0
    %v986 = vmax.f32 %v982, 0.0
    %v987 = vmax.f32 %v983, 0.0
    %v988 = vmax.f32 %v984, 0.0
    %v989 = vadd.f32 %v985, %v986
    %990 = vadd.xlane.f32.xlu0 %v989
    %v991 = vpop.xlane.xlu0 %990
    %v992 = vadd.f32 %v987, %v988
    %993 = vadd.xlane.f32.xlu0 %v992
    %v994 = vpop.xlane.xlu0 %993
    %v995 = vmul.f32 %v991, %v132
    %v996 = vmul.f32 %v994, %v132
    %v997 = vmax.f32 %v985, %v986
    %998 = vmax.xlane.f32.xlu0 %v997
    %v999 = vpop.xlane.xlu0 %998
    %v1000 = vmax.f32 %v987, %v988
    %1001 = vmax.xlane.f32.xlu0 %v1000
    %v1002 = vpop.xlane.xlu0 %1001
    %s1003 = sld [smem:[#allocation7 + $0x28c]]
    %v1004 = vstv %s1003
    %v1005 = vmul.f32 %v995, %v1004
    %v1006 = vmul.f32 %v996, %v1004
    %s1007 = sld [smem:[#allocation7 + $0x30c]]
    %v1008 = vstv %s1007
    %v1009 = vmul.f32 %v999, %v1008
    %v1010 = vmul.f32 %v1002, %v1008
    %v1011 = vadd.f32 %v1005, %v1009
    %v1012 = vadd.f32 %v1006, %v1010
    %v1013 = vadd.f32 %v941, %v1011
    %v1014 = vadd.f32 %v942, %v1012
    %s1015 = sld [smem:[#allocation7 + $0xd]]
    %v1016 = vstv %s1015
    %v1017 = vmul.f32 %v58, %v1016
    %v1018 = vmul.f32 %v59, %v1016
    %v1019 = vmul.f32 %v66, %v1016
    %v1020 = vmul.f32 %v67, %v1016
    %s1021 = sld [smem:[#allocation7 + $0x8d]]
    %v1022 = vstv %s1021
    %v1023 = vmul.f32 %v60, %v1022
    %v1024 = vmul.f32 %v61, %v1022
    %v1025 = vmul.f32 %v68, %v1022
    %v1026 = vmul.f32 %v69, %v1022
    %v1027 = vadd.f32 %v1017, %v1023
    %v1028 = vadd.f32 %v1018, %v1024
    %v1029 = vadd.f32 %v1019, %v1025
    %v1030 = vadd.f32 %v1020, %v1026
    %s1031 = sld [smem:[#allocation7 + $0x10d]]
    %v1032 = vstv %s1031
    %v1033 = vmul.f32 %v62, %v1032
    %v1034 = vmul.f32 %v63, %v1032
    %v1035 = vmul.f32 %v70, %v1032
    %v1036 = vmul.f32 %v71, %v1032
    %v1037 = vadd.f32 %v1027, %v1033
    %v1038 = vadd.f32 %v1028, %v1034
    %v1039 = vadd.f32 %v1029, %v1035
    %v1040 = vadd.f32 %v1030, %v1036
    %s1041 = sld [smem:[#allocation7 + $0x18d]]
    %v1042 = vstv %s1041
    %v1043 = vmul.f32 %v64, %v1042
    %v1044 = vmul.f32 %v65, %v1042
    %v1045 = vmul.f32 %v72, %v1042
    %v1046 = vmul.f32 %v73, %v1042
    %v1047 = vadd.f32 %v1037, %v1043
    %v1048 = vadd.f32 %v1038, %v1044
    %v1049 = vadd.f32 %v1039, %v1045
    %v1050 = vadd.f32 %v1040, %v1046
    %s1051 = sld [smem:[#allocation7 + $0x20d]]
    %v1052 = vstv %s1051
    %v1053 = vadd.f32 %v1047, %v1052
    %v1054 = vadd.f32 %v1048, %v1052
    %v1055 = vadd.f32 %v1049, %v1052
    %v1056 = vadd.f32 %v1050, %v1052
    %v1057 = vmax.f32 %v1053, 0.0
    %v1058 = vmax.f32 %v1054, 0.0
    %v1059 = vmax.f32 %v1055, 0.0
    %v1060 = vmax.f32 %v1056, 0.0
    %v1061 = vadd.f32 %v1057, %v1058
    %1062 = vadd.xlane.f32.xlu0 %v1061
    %v1063 = vpop.xlane.xlu0 %1062
    %v1064 = vadd.f32 %v1059, %v1060
    %1065 = vadd.xlane.f32.xlu0 %v1064
    %v1066 = vpop.xlane.xlu0 %1065
    %v1067 = vmul.f32 %v1063, %v132
    %v1068 = vmul.f32 %v1066, %v132
    %v1069 = vmax.f32 %v1057, %v1058
    %1070 = vmax.xlane.f32.xlu0 %v1069
    %v1071 = vpop.xlane.xlu0 %1070
    %v1072 = vmax.f32 %v1059, %v1060
    %1073 = vmax.xlane.f32.xlu0 %v1072
    %v1074 = vpop.xlane.xlu0 %1073
    %s1075 = sld [smem:[#allocation7 + $0x28d]]
    %v1076 = vstv %s1075
    %v1077 = vmul.f32 %v1067, %v1076
    %v1078 = vmul.f32 %v1068, %v1076
    %s1079 = sld [smem:[#allocation7 + $0x30d]]
    %v1080 = vstv %s1079
    %v1081 = vmul.f32 %v1071, %v1080
    %v1082 = vmul.f32 %v1074, %v1080
    %v1083 = vadd.f32 %v1077, %v1081
    %v1084 = vadd.f32 %v1078, %v1082
    %v1085 = vadd.f32 %v1013, %v1083
    %v1086 = vadd.f32 %v1014, %v1084
    %s1087 = sld [smem:[#allocation7 + $0xe]]
    %v1088 = vstv %s1087
    %v1089 = vmul.f32 %v58, %v1088
    %v1090 = vmul.f32 %v59, %v1088
    %v1091 = vmul.f32 %v66, %v1088
    %v1092 = vmul.f32 %v67, %v1088
    %s1093 = sld [smem:[#allocation7 + $0x8e]]
    %v1094 = vstv %s1093
    %v1095 = vmul.f32 %v60, %v1094
    %v1096 = vmul.f32 %v61, %v1094
    %v1097 = vmul.f32 %v68, %v1094
    %v1098 = vmul.f32 %v69, %v1094
    %v1099 = vadd.f32 %v1089, %v1095
    %v1100 = vadd.f32 %v1090, %v1096
    %v1101 = vadd.f32 %v1091, %v1097
    %v1102 = vadd.f32 %v1092, %v1098
    %s1103 = sld [smem:[#allocation7 + $0x10e]]
    %v1104 = vstv %s1103
    %v1105 = vmul.f32 %v62, %v1104
    %v1106 = vmul.f32 %v63, %v1104
    %v1107 = vmul.f32 %v70, %v1104
    %v1108 = vmul.f32 %v71, %v1104
    %v1109 = vadd.f32 %v1099, %v1105
    %v1110 = vadd.f32 %v1100, %v1106
    %v1111 = vadd.f32 %v1101, %v1107
    %v1112 = vadd.f32 %v1102, %v1108
    %s1113 = sld [smem:[#allocation7 + $0x18e]]
    %v1114 = vstv %s1113
    %v1115 = vmul.f32 %v64, %v1114
    %v1116 = vmul.f32 %v65, %v1114
    %v1117 = vmul.f32 %v72, %v1114
    %v1118 = vmul.f32 %v73, %v1114
    %v1119 = vadd.f32 %v1109, %v1115
    %v1120 = vadd.f32 %v1110, %v1116
    %v1121 = vadd.f32 %v1111, %v1117
    %v1122 = vadd.f32 %v1112, %v1118
    %s1123 = sld [smem:[#allocation7 + $0x20e]]
    %v1124 = vstv %s1123
    %v1125 = vadd.f32 %v1119, %v1124
    %v1126 = vadd.f32 %v1120, %v1124
    %v1127 = vadd.f32 %v1121, %v1124
    %v1128 = vadd.f32 %v1122, %v1124
    %v1129 = vmax.f32 %v1125, 0.0
    %v1130 = vmax.f32 %v1126, 0.0
    %v1131 = vmax.f32 %v1127, 0.0
    %v1132 = vmax.f32 %v1128, 0.0
    %v1133 = vadd.f32 %v1129, %v1130
    %1134 = vadd.xlane.f32.xlu0 %v1133
    %v1135 = vpop.xlane.xlu0 %1134
    %v1136 = vadd.f32 %v1131, %v1132
    %1137 = vadd.xlane.f32.xlu0 %v1136
    %v1138 = vpop.xlane.xlu0 %1137
    %v1139 = vmul.f32 %v1135, %v132
    %v1140 = vmul.f32 %v1138, %v132
    %v1141 = vmax.f32 %v1129, %v1130
    %1142 = vmax.xlane.f32.xlu0 %v1141
    %v1143 = vpop.xlane.xlu0 %1142
    %v1144 = vmax.f32 %v1131, %v1132
    %1145 = vmax.xlane.f32.xlu0 %v1144
    %v1146 = vpop.xlane.xlu0 %1145
    %s1147 = sld [smem:[#allocation7 + $0x28e]]
    %v1148 = vstv %s1147
    %v1149 = vmul.f32 %v1139, %v1148
    %v1150 = vmul.f32 %v1140, %v1148
    %s1151 = sld [smem:[#allocation7 + $0x30e]]
    %v1152 = vstv %s1151
    %v1153 = vmul.f32 %v1143, %v1152
    %v1154 = vmul.f32 %v1146, %v1152
    %v1155 = vadd.f32 %v1149, %v1153
    %v1156 = vadd.f32 %v1150, %v1154
    %v1157 = vadd.f32 %v1085, %v1155
    %v1158 = vadd.f32 %v1086, %v1156
    %s1159 = sld [smem:[#allocation7 + $0xf]]
    %v1160 = vstv %s1159
    %v1161 = vmul.f32 %v58, %v1160
    %v1162 = vmul.f32 %v59, %v1160
    %v1163 = vmul.f32 %v66, %v1160
    %v1164 = vmul.f32 %v67, %v1160
    %s1165 = sld [smem:[#allocation7 + $0x8f]]
    %v1166 = vstv %s1165
    %v1167 = vmul.f32 %v60, %v1166
    %v1168 = vmul.f32 %v61, %v1166
    %v1169 = vmul.f32 %v68, %v1166
    %v1170 = vmul.f32 %v69, %v1166
    %v1171 = vadd.f32 %v1161, %v1167
    %v1172 = vadd.f32 %v1162, %v1168
    %v1173 = vadd.f32 %v1163, %v1169
    %v1174 = vadd.f32 %v1164, %v1170
    %s1175 = sld [smem:[#allocation7 + $0x10f]]
    %v1176 = vstv %s1175
    %v1177 = vmul.f32 %v62, %v1176
    %v1178 = vmul.f32 %v63, %v1176
    %v1179 = vmul.f32 %v70, %v1176
    %v1180 = vmul.f32 %v71, %v1176
    %v1181 = vadd.f32 %v1171, %v1177
    %v1182 = vadd.f32 %v1172, %v1178
    %v1183 = vadd.f32 %v1173, %v1179
    %v1184 = vadd.f32 %v1174, %v1180
    %s1185 = sld [smem:[#allocation7 + $0x18f]]
    %v1186 = vstv %s1185
    %v1187 = vmul.f32 %v64, %v1186
    %v1188 = vmul.f32 %v65, %v1186
    %v1189 = vmul.f32 %v72, %v1186
    %v1190 = vmul.f32 %v73, %v1186
    %v1191 = vadd.f32 %v1181, %v1187
    %v1192 = vadd.f32 %v1182, %v1188
    %v1193 = vadd.f32 %v1183, %v1189
    %v1194 = vadd.f32 %v1184, %v1190
    %s1195 = sld [smem:[#allocation7 + $0x20f]]
    %v1196 = vstv %s1195
    %v1197 = vadd.f32 %v1191, %v1196
    %v1198 = vadd.f32 %v1192, %v1196
    %v1199 = vadd.f32 %v1193, %v1196
    %v1200 = vadd.f32 %v1194, %v1196
    %v1201 = vmax.f32 %v1197, 0.0
    %v1202 = vmax.f32 %v1198, 0.0
    %v1203 = vmax.f32 %v1199, 0.0
    %v1204 = vmax.f32 %v1200, 0.0
    %v1205 = vadd.f32 %v1201, %v1202
    %1206 = vadd.xlane.f32.xlu0 %v1205
    %v1207 = vpop.xlane.xlu0 %1206
    %v1208 = vadd.f32 %v1203, %v1204
    %1209 = vadd.xlane.f32.xlu0 %v1208
    %v1210 = vpop.xlane.xlu0 %1209
    %v1211 = vmul.f32 %v1207, %v132
    %v1212 = vmul.f32 %v1210, %v132
    %v1213 = vmax.f32 %v1201, %v1202
    %1214 = vmax.xlane.f32.xlu0 %v1213
    %v1215 = vpop.xlane.xlu0 %1214
    %v1216 = vmax.f32 %v1203, %v1204
    %1217 = vmax.xlane.f32.xlu0 %v1216
    %v1218 = vpop.xlane.xlu0 %1217
    %s1219 = sld [smem:[#allocation7 + $0x28f]]
    %v1220 = vstv %s1219
    %v1221 = vmul.f32 %v1211, %v1220
    %v1222 = vmul.f32 %v1212, %v1220
    %s1223 = sld [smem:[#allocation7 + $0x30f]]
    %v1224 = vstv %s1223
    %v1225 = vmul.f32 %v1215, %v1224
    %v1226 = vmul.f32 %v1218, %v1224
    %v1227 = vadd.f32 %v1221, %v1225
    %v1228 = vadd.f32 %v1222, %v1226
    %v1229 = vadd.f32 %v1157, %v1227
    %v1230 = vadd.f32 %v1158, %v1228
    %s1231 = sld [smem:[#allocation7 + $0x380]]
    %v1232 = vstv %s1231
    %v1233 = vadd.f32 %v1229, %v1232
    %v1234 = vadd.f32 %v1230, %v1232
    %vm1235 = vcmask 7168
    %1236 = vst.msk [vmem:[#allocation2] sm:$0xff] %vm1235, %v1233
    %1237 = vst.msk [vmem:[#allocation2 + $0x8] sm:$0xff] %vm1235, %v1234
    %p1238 = scmp.eq.s32.totalorder 0, 0
    // Predicated region
    $region26: #{tpu_custom_call.1} parent=1 // pred_check
      %p1239 = pneg %p1238
    $region27: #{tpu_custom_call.1} parent=1 // pred_check_branch
      %1241 = sbr.rel (%p1239) target = $region29
    $region28: #{tpu_custom_call.1} parent=1 // pred_region
      %v1242 = vld [vmem:[#allocation2] sm:$0xff]
      %v1243 = vld [vmem:[#allocation2 + $0x8] sm:$0xff]
      %v1244 = vlaneseq
      %v1245 = vshrl.u32 %v1244, 7
      %v1246 = vlaneseq
      %v1247 = vand.u32 %v1246, 127
      %vm1248 = vcmp.eq.s32.totalorder %v1245, %v1247
      %v1249 = vsel %vm1248, 1, 0
      %v1250 = vcvt.s32.f32 %v1249
      %1252 = vset.pattern.permute.xlu0 0
      %1253 = vperm.xlu0 %1252, %v1242
      %v1254 = vpop.permute.xlu0 %1253
      %1257 = vset.pattern.permute.xlu0 0
      %1258 = vperm.xlu0 %1257, %v1243
      %v1259 = vpop.permute.xlu0 %1258
      %v1261 = vmul.f32 %v1254, %v1250
      %v1262 = vmul.f32 %v1259, %v1250
      %vm1263 = vcmask 64512
      %v1264 = vsel %vm1263, %v1261, 0.0
      %v1265 = vrot.slane %v1264, 4
      %v1266 = vadd.f32 %v1264, %v1265
      %v1267 = vrot.slane %v1266, 2
      %v1268 = vadd.f32 %v1266, %v1267
      %v1269 = vrot.slane %v1268, 1
      %v1270 = vadd.f32 %v1268, %v1269
      %v1271 = vsel %vm1263, %v1262, 0.0
      %v1272 = vrot.slane %v1271, 4
      %v1273 = vadd.f32 %v1271, %v1272
      %v1274 = vrot.slane %v1273, 2
      %v1275 = vadd.f32 %v1273, %v1274
      %v1276 = vrot.slane %v1275, 1
      %v1277 = vadd.f32 %v1275, %v1276
      %vm1278 = vcmp.gt.f32.partialorder %v1270, %v1254
      %vm1279 = vcmp.gt.f32.partialorder %v1277, %v1259
      %vm1280 = vcmp.eq.f32.partialorder %v1270, %v1254
      %vm1281 = vcmp.eq.f32.partialorder %v1277, %v1259
      %vm1282 = vcmp.lt.s32.totalorder %v1247, %v1245
      %v1283 = vsel %vm1282, 1, 0
      %vm1284 = vcmp.eq.s32.totalorder %v1283, 1
      %vm1285 = vmand %vm1280, %vm1284
      %vm1286 = vmand %vm1281, %vm1284
      %vm1287 = vmor %vm1278, %vm1285
      %vm1288 = vmor %vm1279, %vm1286
      %v1289 = vsel %vm1287, 1, 0
      %v1290 = vsel %vm1288, 1, 0
      %v1291 = vsel %vm1263, %v1289, 0
      %v1292 = vand.u32 %v1291, 65535
      %v1293 = vshrl.u32 %v1291, 16
      %v1294 = vcvt.s32.f32 %v1292
      %v1295 = vcvt.s32.f32 %v1293
      %1296 = vadd.xlane.f32.xlu0 %v1294
      %v1297 = vpop.xlane.xlu0 %1296
      %1298 = vadd.xlane.f32.xlu0 %v1295
      %v1299 = vpop.xlane.xlu0 %1298
      %v1300 = vcvt.f32.s32 %v1297
      %v1301 = vcvt.f32.s32 %v1299
      %v1302 = vshll.u32 %v1301, 16
      %v1303 = vadd.s32 %v1302, %v1300
      %v1304 = vsel %vm1263, %v1290, 0
      %v1305 = vand.u32 %v1304, 65535
      %v1306 = vshrl.u32 %v1304, 16
      %v1307 = vcvt.s32.f32 %v1305
      %v1308 = vcvt.s32.f32 %v1306
      %1309 = vadd.xlane.f32.xlu0 %v1307
      %v1310 = vpop.xlane.xlu0 %1309
      %1311 = vadd.xlane.f32.xlu0 %v1308
      %v1312 = vpop.xlane.xlu0 %1311
      %v1313 = vcvt.f32.s32 %v1310
      %v1314 = vcvt.f32.s32 %v1312
      %v1315 = vshll.u32 %v1314, 16
      %v1316 = vadd.s32 %v1315, %v1313
      %v1317 = vld [vmem:[#allocation8] sm:$0xff]
      %vm1318 = vcmp.eq.s32.totalorder %v1303, 0
      %vm1319 = vcmp.eq.s32.totalorder %v1316, 0
      %v1320 = vsel %vm1318, 1, 0
      %v1321 = vsel %vm1319, 1, 0
      %v1322 = vcvt.s32.f32 %v1320
      %v1323 = vcvt.s32.f32 %v1321
      %v1324 = vperm.slane %v1317, 0
      %v1325 = vmul.f32 %v1322, %v1324
      %v1326 = vmul.f32 %v1323, %v1324
      %vm1327 = vcmp.eq.s32.totalorder %v1303, 1
      %vm1328 = vcmp.eq.s32.totalorder %v1316, 1
      %v1329 = vsel %vm1327, 1, 0
      %v1330 = vsel %vm1328, 1, 0
      %v1331 = vcvt.s32.f32 %v1329
      %v1332 = vcvt.s32.f32 %v1330
      %v1333 = vperm.slane %v1317, 1
      %v1334 = vmul.f32 %v1331, %v1333
      %v1335 = vmul.f32 %v1332, %v1333
      %v1336 = vadd.f32 %v1325, %v1334
      %v1337 = vadd.f32 %v1326, %v1335
      %vm1338 = vcmp.eq.s32.totalorder %v1303, 2
      %vm1339 = vcmp.eq.s32.totalorder %v1316, 2
      %v1340 = vsel %vm1338, 1, 0
      %v1341 = vsel %vm1339, 1, 0
      %v1342 = vcvt.s32.f32 %v1340
      %v1343 = vcvt.s32.f32 %v1341
      %v1344 = vperm.slane %v1317, 2
      %v1345 = vmul.f32 %v1342, %v1344
      %v1346 = vmul.f32 %v1343, %v1344
      %v1347 = vadd.f32 %v1336, %v1345
      %v1348 = vadd.f32 %v1337, %v1346
      %vm1349 = vcmp.eq.s32.totalorder %v1303, 3
      %vm1350 = vcmp.eq.s32.totalorder %v1316, 3
      %v1351 = vsel %vm1349, 1, 0
      %v1352 = vsel %vm1350, 1, 0
      %v1353 = vcvt.s32.f32 %v1351
      %v1354 = vcvt.s32.f32 %v1352
      %v1355 = vperm.slane %v1317, 3
      %v1356 = vmul.f32 %v1353, %v1355
      %v1357 = vmul.f32 %v1354, %v1355
      %v1358 = vadd.f32 %v1347, %v1356
      %v1359 = vadd.f32 %v1348, %v1357
      %vm1360 = vcmp.eq.s32.totalorder %v1303, 4
      %vm1361 = vcmp.eq.s32.totalorder %v1316, 4
      %v1362 = vsel %vm1360, 1, 0
      %v1363 = vsel %vm1361, 1, 0
      %v1364 = vcvt.s32.f32 %v1362
      %v1365 = vcvt.s32.f32 %v1363
      %v1366 = vperm.slane %v1317, 4
      %v1367 = vmul.f32 %v1364, %v1366
      %v1368 = vmul.f32 %v1365, %v1366
      %v1369 = vadd.f32 %v1358, %v1367
      %v1370 = vadd.f32 %v1359, %v1368
      %vm1371 = vcmp.eq.s32.totalorder %v1303, 5
      %vm1372 = vcmp.eq.s32.totalorder %v1316, 5
      %v1373 = vsel %vm1371, 1, 0
      %v1374 = vsel %vm1372, 1, 0
      %v1375 = vcvt.s32.f32 %v1373
      %v1376 = vcvt.s32.f32 %v1374
      %v1377 = vperm.slane %v1317, 5
      %v1378 = vmul.f32 %v1375, %v1377
      %v1379 = vmul.f32 %v1376, %v1377
      %v1380 = vadd.f32 %v1369, %v1378
      %v1381 = vadd.f32 %v1370, %v1379
      %vm1382 = vcmp.eq.s32.totalorder %v1303, 6
      %vm1383 = vcmp.eq.s32.totalorder %v1316, 6
      %v1384 = vsel %vm1382, 1, 0
      %v1385 = vsel %vm1383, 1, 0
      %v1386 = vcvt.s32.f32 %v1384
      %v1387 = vcvt.s32.f32 %v1385
      %v1388 = vperm.slane %v1317, 6
      %v1389 = vmul.f32 %v1386, %v1388
      %v1390 = vmul.f32 %v1387, %v1388
      %v1391 = vadd.f32 %v1380, %v1389
      %v1392 = vadd.f32 %v1381, %v1390
      %vm1393 = vcmp.eq.s32.totalorder %v1303, 7
      %vm1394 = vcmp.eq.s32.totalorder %v1316, 7
      %v1395 = vsel %vm1393, 1, 0
      %v1396 = vsel %vm1394, 1, 0
      %v1397 = vcvt.s32.f32 %v1395
      %v1398 = vcvt.s32.f32 %v1396
      %v1399 = vperm.slane %v1317, 7
      %v1400 = vmul.f32 %v1397, %v1399
      %v1401 = vmul.f32 %v1398, %v1399
      %v1402 = vadd.f32 %v1391, %v1400
      %v1403 = vadd.f32 %v1392, %v1401
      %v1404 = vmul.f32 %v1254, %v1402
      %v1405 = vmul.f32 %v1259, %v1403
      %vm1406 = vcmask 48128
      %v1407 = vsel %vm1406, %v1404, 0.0
      %v1408 = vrot.slane %v1407, 4
      %v1409 = vadd.f32 %v1407, %v1408
      %v1410 = vrot.slane %v1409, 2
      %v1411 = vadd.f32 %v1409, %v1410
      %v1412 = vrot.slane %v1411, 1
      %v1413 = vadd.f32 %v1411, %v1412
      %v1414 = vsel %vm1406, %v1405, 0.0
      %v1415 = vrot.slane %v1414, 4
      %v1416 = vadd.f32 %v1414, %v1415
      %v1417 = vrot.slane %v1416, 2
      %v1418 = vadd.f32 %v1416, %v1417
      %v1419 = vrot.slane %v1418, 1
      %v1420 = vadd.f32 %v1418, %v1419
      %vm1421 = vcmask 40960
      %1422 = vst.msk [vmem:[#allocation10] sm:$0x1] %vm1421, %v1413
      %1423 = vst.msk [vmem:[#allocation10 + $0x1] sm:$0x1] %vm1421, %v1420
    $region29: #{tpu_custom_call.1} parent=1 // pred_fallthru
      _
    // Predicated region
    $region30: #{tpu_custom_call.1} parent=1 // pred_check
      _
    $region31: #{tpu_custom_call.1} parent=1 // pred_check_branch
      %1425 = sbr.rel (0) target = $region33
    $region32: #{tpu_custom_call.1} parent=1 // pred_region
      %1427 = vsyncadd [#allocation5], 0
      %s1428 = sshll.u32 [#allocation10], 4
      %s1429 = int_to_ptr.vmem [resolvable:$true] %s1428
      %s1430 = sshll.u32 %s3, 4
      %s1431 = int_to_ptr.hbm [resolvable:$true] %s1430
      %1436 = dma.vmem_to_hbm [thread:$0]  %s1429, 32, %s1431, [#allocation5], 16, 16, 1
    $region33: #{tpu_custom_call.1} parent=1 // pred_fallthru
      _
    // Predicated region
    $region34: #{tpu_custom_call.1} parent=1 // pred_check
      _
    $region35: #{tpu_custom_call.1} parent=1 // pred_check_branch
      %1438 = sbr.rel (0) target = $region37
    $region36: #{tpu_custom_call.1} parent=1 // pred_region
      %1440 = dma.done [#allocation5], 32
    $region37: #{tpu_custom_call.1} parent=1 // pred_fallthru
      _
    %1441 = vsyncpa [#allocation4], 1
    %1442 = vsyncpa [#allocation9], 1
    %1443 = vsyncpa [#allocation5], 1
    %1444 = vsyncpa [#allocation6], 1

</llo_original>
